<compile_context>
chip_gen: v7x
topology: tpu7x:2x2x1
jax: 0.10.0
libtpu: 0.0.40
codegen_flags: <defaults>
</compile_context>

<pallas_src>
import math
import jax
import jax.numpy as jnp
from jax.experimental import pallas as pl
from jax.experimental.pallas import tpu as pltpu

LANE = 128


def _round_up(n: int, m: int) -> int:
    return ((n + m - 1) // m) * m


def _pad_cols(a, n):
    return a if a.shape[1] == n else jnp.pad(a, ((0, 0), (0, n - a.shape[1])))


def _pad_rows(a, n):
    return a if a.shape[0] == n else jnp.pad(a, ((0, n - a.shape[0]), (0, 0)))


def make_herglotznet_kernel(n_linear: int, input_dim: int, bf16_act: bool):
    """n_linear = (1 + hidden_layers) hidden linears + 1 last linear."""
    act_dtype = jnp.bfloat16 if bf16_act else jnp.float32

    def kernel(*refs):
        x_ref, ar_ref, ai_ref = refs[0], refs[1], refs[2]
        o_ref = refs[-1]

        x = x_ref[...]            # (TB, input_dim) f32 (tail rows may be padding)
        ar = ar_ref[...]          # (input_dim, NA)  omega0 already folded in
        ai = ai_ref[...]

        # ---- Herglotz positional encoding: VPU broadcast-FMA (K is only 2/3,
        # a terrible MXU fit), phases kept in f32 for accuracy. ----
        zr = x[:, 0:1] * ar[0:1, :]
        zi = x[:, 0:1] * ai[0:1, :]
        for k in range(1, input_dim):
            zr = zr + x[:, k:k + 1] * ar[k:k + 1, :]
            zi = zi + x[:, k:k + 1] * ai[k:k + 1, :]
        # NOTE: padded tail rows of x may produce inf/NaN here; they are never
        # stored (masked out-of-range rows) and there is no cross-row reduction.
        h = (jnp.exp(-zi) * jnp.cos(zr)).astype(act_dtype)   # (TB, NA)

        # ---- hidden linears, each followed by sin ----
        for li in range(n_linear - 1):
            w_ref = refs[3 + 2 * li]
            b_ref = refs[4 + 2 * li]
            pre = jnp.dot(h, w_ref[...], preferred_element_type=jnp.float32)
            pre = pre + b_ref[...]
            h = jnp.sin(pre.astype(act_dtype))

        # ---- last layer: outermost_linear=True -> no sin ----
        wl_ref = refs[3 + 2 * (n_linear - 1)]
        bl_ref = refs[4 + 2 * (n_linear - 1)]
        out = jnp.dot(h, wl_ref[...], preferred_element_type=jnp.float32)
        out = out + bl_ref[...]
        o_ref[...] = out.astype(o_ref.dtype)

    return kernel


def herglotznet_forward(x, a_r_t, a_i_t, weights, biases, *, omega0=1.0,
                        tb=512, bf16_activations=False, pad_lanes=True):
    """x: (B, d); a_r_t/a_i_t: (d, num_atoms); weights[i]: (in, out); biases[i]: (1, out)."""
    B, d = x.shape
    out_features = weights[-1].shape[1]
    n_linear = len(weights)
    num_atoms = a_r_t.shape[1]

    # -------- wrapper-side constant prep (once per call, negligible) --------
    # Fold omega0 into the atoms; removes two full-tile VPU multiplies per step.
    ar = jnp.asarray(a_r_t, jnp.float32) * float(omega0)
    ai = jnp.asarray(a_i_t, jnp.float32) * float(omega0)

    layer_in = [num_atoms] + [w.shape[1] for w in weights[:-1]]
    layer_out = [w.shape[1] for w in weights]
    if pad_lanes:
        na_p = _round_up(num_atoms, LANE)
        out_p = [_round_up(n, LANE) for n in layer_out]
    else:
        na_p = num_atoms
        out_p = list(layer_out)
    in_p = [na_p] + out_p[:-1]

    ar = _pad_cols(ar, na_p)
    ai = _pad_cols(ai, na_p)

    w_dtype = jnp.bfloat16 if bf16_activations else jnp.float32
    w_pad, b_pad = [], []
    for w, b, fi, fo in zip(weights, biases, in_p, out_p):
        wp = _pad_rows(_pad_cols(jnp.asarray(w, jnp.float32), fo), fi)
        w_pad.append(wp.astype(w_dtype))
        b_pad.append(_pad_cols(jnp.asarray(b, jnp.float32), fo))

    # -------- tiling: big batch tile, clamped for small B --------
    tb_eff = max(8, min(int(tb), _round_up(B, 8)))
    grid = (pl.cdiv(B, tb_eff),)

    kernel = make_herglotznet_kernel(n_linear, d, bf16_activations)

    in_specs = [
        pl.BlockSpec((tb_eff, d), lambda i: (i, 0)),     # x tile per grid step
        pl.BlockSpec(ar.shape, lambda i: (0, 0)),        # atoms: full, VMEM-resident
        pl.BlockSpec(ai.shape, lambda i: (0, 0)),
    ]
    operands = [x, ar, ai]
    for w, b in zip(w_pad, b_pad):
        in_specs.append(pl.BlockSpec(w.shape, lambda i: (0, 0)))   # resident
        in_specs.append(pl.BlockSpec(b.shape, lambda i: (0, 0)))
        operands += [w, b]

    out_padded = out_p[-1]
    out_specs = pl.BlockSpec((tb_eff, out_padded), lambda i: (i, 0))

    out_full = pl.pallas_call(
        kernel,
        grid=grid,
        in_specs=in_specs,
        out_specs=out_specs,
        out_shape=jax.ShapeDtypeStruct((B, out_padded), x.dtype),
        compiler_params=pltpu.CompilerParams(
            dimension_semantics=("parallel",),
            vmem_limit_bytes=64 << 20,
        ),
    )(*operands)

    return out_full[:, :out_features]


def init_herglotznet_params(key, num_atoms, hidden_layers, hidden_features,
                            out_features, input_dim=3):
    """Deterministic init mirroring HerglotzNet.__init__ / init_weights (SIREN-style)."""
    n_linear = hidden_layers + 2  # (1 + hidden_layers) hidden linears + last layer
    keys = jax.random.split(key, 2 + n_linear)

    # Herglotz atoms: a_R, a_I orthonormal pair scaled by 1/sqrt(2)  =>  a·a = 0
    u = jax.random.normal(keys[0], (num_atoms, input_dim), dtype=jnp.float32)
    v = jax.random.normal(keys[1], (num_atoms, input_dim), dtype=jnp.float32)
    u_hat = u / jnp.linalg.norm(u, axis=-1, keepdims=True)
    v_orth = v - jnp.sum(v * u_hat, axis=-1, keepdims=True) * u_hat
    v_hat = v_orth / jnp.linalg.norm(v_orth, axis=-1, keepdims=True)
    a_r = u_hat / jnp.sqrt(2.0)
    a_i = v_hat / jnp.sqrt(2.0)

    # SIREN-style init: U(-sqrt(6/fan_in), sqrt(6/fan_in)), bias = 0
    dims_in = [num_atoms] + [hidden_features] * (hidden_layers + 1)
    dims_out = [hidden_features] * (hidden_layers + 1) + [out_features]
    weights, biases = [], []
    for li, (fi, fo) in enumerate(zip(dims_in, dims_out)):
        bound = math.sqrt(6.0 / fi)
        w = jax.random.uniform(keys[2 + li], (fi, fo), jnp.float32, -bound, bound)
        weights.append(w)
        biases.append(jnp.zeros((1, fo), jnp.float32))

    return a_r.T, a_i.T, weights, biases   # atoms transposed to (d, num_atoms)


def herglotznet_reference(x, a_r_t, a_i_t, weights, biases, omega0=1.0):
    zr = omega0 * (x @ a_r_t)
    zi = omega0 * (x @ a_i_t)
    h = jnp.exp(-zi) * jnp.cos(zr)
    for w, b in zip(weights[:-1], biases[:-1]):
        h = jnp.sin(h @ w + b)
    return h @ weights[-1] + biases[-1]


if __name__ == "__main__":
    # Small shapes: input_domain="s2" -> 3-D inputs on the sphere.
    B = 16
    NUM_ATOMS = 32
    HIDDEN_LAYERS = 2
    HIDDEN_FEATURES = 32
    OUT_FEATURES = 4
    OMEGA0 = 1.0

    key = jax.random.PRNGKey(0)
    kx, kp = jax.random.split(key)

    pts = jax.random.normal(kx, (B, 3), dtype=jnp.float32)
    x = pts / jnp.linalg.norm(pts, axis=-1, keepdims=True)   # points on S^2

    a_r_t, a_i_t, weights, biases = init_herglotznet_params(
        kp, NUM_ATOMS, HIDDEN_LAYERS, HIDDEN_FEATURES, OUT_FEATURES)

    # f32 path (bf16_activations=False) so the reference check is tight; on
    # v6e/v7x flip bf16_activations=True for ~2x packed EUP/MXU throughput.
    out = herglotznet_forward(x, a_r_t, a_i_t, weights, biases,
                              omega0=OMEGA0, tb=512, bf16_activations=False)
    out = jax.block_until_ready(out)

    ref = herglotznet_reference(x, a_r_t, a_i_t, weights, biases, OMEGA0)
    assert out.shape == (B, OUT_FEATURES), out.shape
    assert jnp.allclose(out, ref, atol=1e-5, rtol=1e-5), \
        float(jnp.max(jnp.abs(out - ref)))

    print("KERNEL_OK")
</pallas_src>

<mosaic_0001>
module attributes {stable_mosaic.version = 11 : i64} {
  func.func @kernel(%arg0: i32, %arg1: memref<16x3xf32, #tpu.memory_space<vmem>>, %arg2: memref<3x128xf32, #tpu.memory_space<vmem>>, %arg3: memref<3x128xf32, #tpu.memory_space<vmem>>, %arg4: memref<128x128xf32, #tpu.memory_space<vmem>>, %arg5: memref<1x128xf32, #tpu.memory_space<vmem>>, %arg6: memref<128x128xf32, #tpu.memory_space<vmem>>, %arg7: memref<1x128xf32, #tpu.memory_space<vmem>>, %arg8: memref<128x128xf32, #tpu.memory_space<vmem>>, %arg9: memref<1x128xf32, #tpu.memory_space<vmem>>, %arg10: memref<128x128xf32, #tpu.memory_space<vmem>>, %arg11: memref<1x128xf32, #tpu.memory_space<vmem>>, %arg12: memref<16x128xf32, #tpu.memory_space<vmem>>) attributes {dimension_semantics = [#tpu.dimension_semantics<parallel>], iteration_bounds = array<i64: 1>, scalar_prefetch = 0 : i64, scratch_operands = 0 : i64, tpu.core_type = #tpu.core_type<tc>, window_params = [{transform_indices = @transform_0, window_bounds = array<i64: 16, 3>}, {pipeline_mode = #tpu.pipeline_mode<synchronous>, transform_indices = @transform_1, window_bounds = array<i64: 3, 128>}, {pipeline_mode = #tpu.pipeline_mode<synchronous>, transform_indices = @transform_2, window_bounds = array<i64: 3, 128>}, {pipeline_mode = #tpu.pipeline_mode<synchronous>, transform_indices = @transform_3, window_bounds = array<i64: 128, 128>}, {pipeline_mode = #tpu.pipeline_mode<synchronous>, transform_indices = @transform_4, window_bounds = array<i64: 1, 128>}, {pipeline_mode = #tpu.pipeline_mode<synchronous>, transform_indices = @transform_5, window_bounds = array<i64: 128, 128>}, {pipeline_mode = #tpu.pipeline_mode<synchronous>, transform_indices = @transform_6, window_bounds = array<i64: 1, 128>}, {pipeline_mode = #tpu.pipeline_mode<synchronous>, transform_indices = @transform_7, window_bounds = array<i64: 128, 128>}, {pipeline_mode = #tpu.pipeline_mode<synchronous>, transform_indices = @transform_8, window_bounds = array<i64: 1, 128>}, {pipeline_mode = #tpu.pipeline_mode<synchronous>, transform_indices = @transform_9, window_bounds = array<i64: 128, 128>}, {pipeline_mode = #tpu.pipeline_mode<synchronous>, transform_indices = @transform_10, window_bounds = array<i64: 1, 128>}, {transform_indices = @transform_11, window_bounds = array<i64: 16, 128>}]} {
    %c0 = arith.constant 0 : index
    %c0_0 = arith.constant 0 : index
    %0 = vector.load %arg1[%c0, %c0_0] : memref<16x3xf32, #tpu.memory_space<vmem>>, vector<16x3xf32>
    %c0_1 = arith.constant 0 : index
    %c0_2 = arith.constant 0 : index
    %1 = vector.load %arg2[%c0_1, %c0_2] : memref<3x128xf32, #tpu.memory_space<vmem>>, vector<3x128xf32>
    %c0_3 = arith.constant 0 : index
    %c0_4 = arith.constant 0 : index
    %2 = vector.load %arg3[%c0_3, %c0_4] : memref<3x128xf32, #tpu.memory_space<vmem>>, vector<3x128xf32>
    %3 = vector.extract_strided_slice %0 {offsets = [0, 0], sizes = [16, 1], strides = [1, 1]} : vector<16x3xf32> to vector<16x1xf32>
    %4 = vector.extract_strided_slice %1 {offsets = [0, 0], sizes = [1, 128], strides = [1, 1]} : vector<3x128xf32> to vector<1x128xf32>
    %5 = vector.broadcast %3 : vector<16x1xf32> to vector<16x128xf32>
    %6 = vector.broadcast %4 : vector<1x128xf32> to vector<16x128xf32>
    %7 = arith.mulf %5, %6 : vector<16x128xf32>
    %8 = vector.extract_strided_slice %0 {offsets = [0, 0], sizes = [16, 1], strides = [1, 1]} : vector<16x3xf32> to vector<16x1xf32>
    %9 = vector.extract_strided_slice %2 {offsets = [0, 0], sizes = [1, 128], strides = [1, 1]} : vector<3x128xf32> to vector<1x128xf32>
    %10 = vector.broadcast %8 : vector<16x1xf32> to vector<16x128xf32>
    %11 = vector.broadcast %9 : vector<1x128xf32> to vector<16x128xf32>
    %12 = arith.mulf %10, %11 : vector<16x128xf32>
    %13 = vector.extract_strided_slice %0 {offsets = [0, 1], sizes = [16, 1], strides = [1, 1]} : vector<16x3xf32> to vector<16x1xf32>
    %14 = vector.extract_strided_slice %1 {offsets = [1, 0], sizes = [1, 128], strides = [1, 1]} : vector<3x128xf32> to vector<1x128xf32>
    %15 = vector.broadcast %13 : vector<16x1xf32> to vector<16x128xf32>
    %16 = vector.broadcast %14 : vector<1x128xf32> to vector<16x128xf32>
    %17 = arith.mulf %15, %16 : vector<16x128xf32>
    %18 = arith.addf %7, %17 : vector<16x128xf32>
    %19 = vector.extract_strided_slice %0 {offsets = [0, 1], sizes = [16, 1], strides = [1, 1]} : vector<16x3xf32> to vector<16x1xf32>
    %20 = vector.extract_strided_slice %2 {offsets = [1, 0], sizes = [1, 128], strides = [1, 1]} : vector<3x128xf32> to vector<1x128xf32>
    %21 = vector.broadcast %19 : vector<16x1xf32> to vector<16x128xf32>
    %22 = vector.broadcast %20 : vector<1x128xf32> to vector<16x128xf32>
    %23 = arith.mulf %21, %22 : vector<16x128xf32>
    %24 = arith.addf %12, %23 : vector<16x128xf32>
    %25 = vector.extract_strided_slice %0 {offsets = [0, 2], sizes = [16, 1], strides = [1, 1]} : vector<16x3xf32> to vector<16x1xf32>
    %26 = vector.extract_strided_slice %1 {offsets = [2, 0], sizes = [1, 128], strides = [1, 1]} : vector<3x128xf32> to vector<1x128xf32>
    %27 = vector.broadcast %25 : vector<16x1xf32> to vector<16x128xf32>
    %28 = vector.broadcast %26 : vector<1x128xf32> to vector<16x128xf32>
    %29 = arith.mulf %27, %28 : vector<16x128xf32>
    %30 = arith.addf %18, %29 : vector<16x128xf32>
    %31 = vector.extract_strided_slice %0 {offsets = [0, 2], sizes = [16, 1], strides = [1, 1]} : vector<16x3xf32> to vector<16x1xf32>
    %32 = vector.extract_strided_slice %2 {offsets = [2, 0], sizes = [1, 128], strides = [1, 1]} : vector<3x128xf32> to vector<1x128xf32>
    %33 = vector.broadcast %31 : vector<16x1xf32> to vector<16x128xf32>
    %34 = vector.broadcast %32 : vector<1x128xf32> to vector<16x128xf32>
    %35 = arith.mulf %33, %34 : vector<16x128xf32>
    %36 = arith.addf %24, %35 : vector<16x128xf32>
    %cst = arith.constant 0.000000e+00 : f32
    %37 = vector.broadcast %cst : f32 to vector<16x128xf32>
    %38 = arith.subf %37, %36 : vector<16x128xf32>
    %39 = math.exp %38 : vector<16x128xf32>
    %40 = math.cos %30 : vector<16x128xf32>
    %41 = arith.mulf %39, %40 : vector<16x128xf32>
    %c0_5 = arith.constant 0 : index
    %c0_6 = arith.constant 0 : index
    %42 = vector.load %arg4[%c0_5, %c0_6] : memref<128x128xf32, #tpu.memory_space<vmem>>, vector<128x128xf32>
    %cst_7 = arith.constant dense<0.000000e+00> : vector<16x128xf32>
    %43 = tpu.matmul %41, %42, %cst_7 {dimension_numbers = #tpu.dot_dimension_numbers<[1], [0], [0], [1], [0, 0, 1, 1], [], []>} : vector<16x128xf32>, vector<128x128xf32>, vector<16x128xf32> -> vector<16x128xf32>
    %c0_8 = arith.constant 0 : index
    %c0_9 = arith.constant 0 : index
    %44 = vector.load %arg5[%c0_8, %c0_9] : memref<1x128xf32, #tpu.memory_space<vmem>>, vector<1x128xf32>
    %45 = vector.broadcast %44 : vector<1x128xf32> to vector<16x128xf32>
    %46 = arith.addf %43, %45 : vector<16x128xf32>
    %47 = math.sin %46 : vector<16x128xf32>
    %c0_10 = arith.constant 0 : index
    %c0_11 = arith.constant 0 : index
    %48 = vector.load %arg6[%c0_10, %c0_11] : memref<128x128xf32, #tpu.memory_space<vmem>>, vector<128x128xf32>
    %cst_12 = arith.constant dense<0.000000e+00> : vector<16x128xf32>
    %49 = tpu.matmul %47, %48, %cst_12 {dimension_numbers = #tpu.dot_dimension_numbers<[1], [0], [0], [1], [0, 0, 1, 1], [], []>} : vector<16x128xf32>, vector<128x128xf32>, vector<16x128xf32> -> vector<16x128xf32>
    %c0_13 = arith.constant 0 : index
    %c0_14 = arith.constant 0 : index
    %50 = vector.load %arg7[%c0_13, %c0_14] : memref<1x128xf32, #tpu.memory_space<vmem>>, vector<1x128xf32>
    %51 = vector.broadcast %50 : vector<1x128xf32> to vector<16x128xf32>
    %52 = arith.addf %49, %51 : vector<16x128xf32>
    %53 = math.sin %52 : vector<16x128xf32>
    %c0_15 = arith.constant 0 : index
    %c0_16 = arith.constant 0 : index
    %54 = vector.load %arg8[%c0_15, %c0_16] : memref<128x128xf32, #tpu.memory_space<vmem>>, vector<128x128xf32>
    %cst_17 = arith.constant dense<0.000000e+00> : vector<16x128xf32>
    %55 = tpu.matmul %53, %54, %cst_17 {dimension_numbers = #tpu.dot_dimension_numbers<[1], [0], [0], [1], [0, 0, 1, 1], [], []>} : vector<16x128xf32>, vector<128x128xf32>, vector<16x128xf32> -> vector<16x128xf32>
    %c0_18 = arith.constant 0 : index
    %c0_19 = arith.constant 0 : index
    %56 = vector.load %arg9[%c0_18, %c0_19] : memref<1x128xf32, #tpu.memory_space<vmem>>, vector<1x128xf32>
    %57 = vector.broadcast %56 : vector<1x128xf32> to vector<16x128xf32>
    %58 = arith.addf %55, %57 : vector<16x128xf32>
    %59 = math.sin %58 : vector<16x128xf32>
    %c0_20 = arith.constant 0 : index
    %c0_21 = arith.constant 0 : index
    %60 = vector.load %arg10[%c0_20, %c0_21] : memref<128x128xf32, #tpu.memory_space<vmem>>, vector<128x128xf32>
    %cst_22 = arith.constant dense<0.000000e+00> : vector<16x128xf32>
    %61 = tpu.matmul %59, %60, %cst_22 {dimension_numbers = #tpu.dot_dimension_numbers<[1], [0], [0], [1], [0, 0, 1, 1], [], []>} : vector<16x128xf32>, vector<128x128xf32>, vector<16x128xf32> -> vector<16x128xf32>
    %c0_23 = arith.constant 0 : index
    %c0_24 = arith.constant 0 : index
    %62 = vector.load %arg11[%c0_23, %c0_24] : memref<1x128xf32, #tpu.memory_space<vmem>>, vector<1x128xf32>
    %63 = vector.broadcast %62 : vector<1x128xf32> to vector<16x128xf32>
    %64 = arith.addf %61, %63 : vector<16x128xf32>
    %c0_25 = arith.constant 0 : index
    %c0_26 = arith.constant 0 : index
    %65 = vector.load %arg12[%c0_25, %c0_26] : memref<16x128xf32, #tpu.memory_space<vmem>>, vector<16x128xf32>
    tpu.vector_store %arg12[%c0_25, %c0_26], %64 {strides = array<i32>} : memref<16x128xf32, #tpu.memory_space<vmem>>, vector<16x128xf32>,
    return
  }
  func.func @transform_0(%arg0: i32) -> (i32, i32) {
    %c0_i32 = arith.constant 0 : i32
    %c0_i32_0 = arith.constant 0 : i32
    return %arg0, %c0_i32 : i32, i32
  }
  func.func @transform_1(%arg0: i32) -> (i32, i32) {
    %c0_i32 = arith.constant 0 : i32
    %c0_i32_0 = arith.constant 0 : i32
    %c0_i32_1 = arith.constant 0 : i32
    return %c0_i32, %c0_i32_0 : i32, i32
  }
  func.func @transform_2(%arg0: i32) -> (i32, i32) {
    %c0_i32 = arith.constant 0 : i32
    %c0_i32_0 = arith.constant 0 : i32
    %c0_i32_1 = arith.constant 0 : i32
    return %c0_i32, %c0_i32_0 : i32, i32
  }
  func.func @transform_3(%arg0: i32) -> (i32, i32) {
    %c0_i32 = arith.constant 0 : i32
    %c0_i32_0 = arith.constant 0 : i32
    %c0_i32_1 = arith.constant 0 : i32
    return %c0_i32, %c0_i32_0 : i32, i32
  }
  func.func @transform_4(%arg0: i32) -> (i32, i32) {
    %c0_i32 = arith.constant 0 : i32
    %c0_i32_0 = arith.constant 0 : i32
    %c0_i32_1 = arith.constant 0 : i32
    return %c0_i32, %c0_i32_0 : i32, i32
  }
  func.func @transform_5(%arg0: i32) -> (i32, i32) {
    %c0_i32 = arith.constant 0 : i32
    %c0_i32_0 = arith.constant 0 : i32
    %c0_i32_1 = arith.constant 0 : i32
    return %c0_i32, %c0_i32_0 : i32, i32
  }
  func.func @transform_6(%arg0: i32) -> (i32, i32) {
    %c0_i32 = arith.constant 0 : i32
    %c0_i32_0 = arith.constant 0 : i32
    %c0_i32_1 = arith.constant 0 : i32
    return %c0_i32, %c0_i32_0 : i32, i32
  }
  func.func @transform_7(%arg0: i32) -> (i32, i32) {
    %c0_i32 = arith.constant 0 : i32
    %c0_i32_0 = arith.constant 0 : i32
    %c0_i32_1 = arith.constant 0 : i32
    return %c0_i32, %c0_i32_0 : i32, i32
  }
  func.func @transform_8(%arg0: i32) -> (i32, i32) {
    %c0_i32 = arith.constant 0 : i32
    %c0_i32_0 = arith.constant 0 : i32
    %c0_i32_1 = arith.constant 0 : i32
    return %c0_i32, %c0_i32_0 : i32, i32
  }
  func.func @transform_9(%arg0: i32) -> (i32, i32) {
    %c0_i32 = arith.constant 0 : i32
    %c0_i32_0 = arith.constant 0 : i32
    %c0_i32_1 = arith.constant 0 : i32
    return %c0_i32, %c0_i32_0 : i32, i32
  }
  func.func @transform_10(%arg0: i32) -> (i32, i32) {
    %c0_i32 = arith.constant 0 : i32
    %c0_i32_0 = arith.constant 0 : i32
    %c0_i32_1 = arith.constant 0 : i32
    return %c0_i32, %c0_i32_0 : i32, i32
  }
  func.func @transform_11(%arg0: i32) -> (i32, i32) {
    %c0_i32 = arith.constant 0 : i32
    %c0_i32_0 = arith.constant 0 : i32
    return %arg0, %c0_i32 : i32, i32
  }
}

</mosaic_0001>

<llo_original>
// kernel: tpu_custom_call.1
$region0: #{tpu_custom_call.1}
  #allocation0 [shape = 'u32[]', space=smem, size = 0x4, offset = 0x4, fixed_abs, tag = 'smem constant byte address 0x4 - core index']
  #allocation1 [shape = 'u32[144,128]{1,0:T(1,128)}', space=vmem, size = 0x12000, scoped, tag = 'internal scratch']
  %s0 = inlined_call_operand.hbm [shape: f32[16,3], index: 0, kind: input, shape index: {}]
  %s1 = inlined_call_operand.hbm [shape: f32[3,128], index: 1, kind: input, shape index: {}]
  %s2 = inlined_call_operand.hbm [shape: f32[3,128], index: 2, kind: input, shape index: {}]
  %s3 = inlined_call_operand.hbm [shape: f32[128,128], index: 3, kind: input, shape index: {}]
  %s4 = inlined_call_operand.hbm [shape: f32[1,128], index: 4, kind: input, shape index: {}]
  %s5 = inlined_call_operand.hbm [shape: f32[128,128], index: 5, kind: input, shape index: {}]
  %s6 = inlined_call_operand.hbm [shape: f32[1,128], index: 6, kind: input, shape index: {}]
  %s7 = inlined_call_operand.hbm [shape: f32[128,128], index: 7, kind: input, shape index: {}]
  %s8 = inlined_call_operand.hbm [shape: f32[1,128], index: 8, kind: input, shape index: {}]
  %s9 = inlined_call_operand.hbm [shape: f32[128,128], index: 9, kind: input, shape index: {}]
  %s10 = inlined_call_operand.hbm [shape: f32[1,128], index: 10, kind: input, shape index: {}]
  %s11 = inlined_call_operand.hbm [shape: f32[16,128], index: 11, kind: output, shape index: {}]
  %s12 = sld [smem:[#allocation0]]
  $region98: #{tpu_custom_call.1} parent=0
    _
  %s14 = ssub.s32 1, %s12
  %s15 = scalar_select 0, %s14, %s12
  $region1: #{tpu_custom_call.1} parent=0
    #allocation2 [shape = 'u8[8192]{0}', space=vmem, size = 0x2000, scoped, tag = 'input window, operand 0, single buffered']
    #allocation3 [shape = 's32[1]{0}', space=sflag, size = 0x4, scoped, tag = 'scoped memory for tpu_custom_call.1']
    #allocation4 [shape = 's32[1]{0}', space=sflag, size = 0x4, scoped, tag = 'scoped memory for tpu_custom_call.1']
    #allocation5 [shape = 'u8[2048]{0}', space=vmem, size = 0x800, scoped, tag = 'input window, operand 1, single buffered']
    #allocation6 [shape = 's32[1]{0}', space=sflag, size = 0x4, scoped, tag = 'scoped memory for tpu_custom_call.1']
    #allocation7 [shape = 'u8[2048]{0}', space=vmem, size = 0x800, scoped, tag = 'input window, operand 2, single buffered']
    #allocation8 [shape = 'u8[65536]{0}', space=vmem, size = 0x10000, scoped, tag = 'input window, operand 3, single buffered']
    #allocation9 [shape = 's32[1]{0}', space=sflag, size = 0x4, scoped, tag = 'scoped memory for tpu_custom_call.1']
    #allocation10 [shape = 'u8[512]{0}', space=vmem, size = 0x400, scoped, tag = 'input window, operand 4, single buffered']
    #allocation11 [shape = 'u8[65536]{0}', space=vmem, size = 0x10000, scoped, tag = 'input window, operand 5, single buffered']
    #allocation12 [shape = 's32[1]{0}', space=sflag, size = 0x4, scoped, tag = 'scoped memory for tpu_custom_call.1']
    #allocation13 [shape = 'u8[512]{0}', space=vmem, size = 0x400, scoped, tag = 'input window, operand 6, single buffered']
    #allocation14 [shape = 'u8[65536]{0}', space=vmem, size = 0x10000, scoped, tag = 'input window, operand 7, single buffered']
    #allocation15 [shape = 's32[1]{0}', space=sflag, size = 0x4, scoped, tag = 'scoped memory for tpu_custom_call.1']
    #allocation16 [shape = 'u8[512]{0}', space=vmem, size = 0x400, scoped, tag = 'input window, operand 8, single buffered']
    #allocation17 [shape = 'u8[65536]{0}', space=vmem, size = 0x10000, scoped, tag = 'input window, operand 9, single buffered']
    #allocation18 [shape = 's32[1]{0}', space=sflag, size = 0x4, scoped, tag = 'scoped memory for tpu_custom_call.1']
    #allocation19 [shape = 'u8[512]{0}', space=vmem, size = 0x400, scoped, tag = 'input window, operand 10, single buffered']
    #allocation20 [shape = 'u8[8192]{0}', space=vmem, size = 0x2000, scoped, tag = 'output window, operand 0, single buffered']
    %16 = vsyncpa [#allocation3], 0
    %17 = vsyncpa [#allocation6], 0
    %18 = vsyncpa [#allocation9], 0
    %19 = vsyncpa [#allocation12], 0
    %20 = vsyncpa [#allocation15], 0
    %21 = vsyncpa [#allocation18], 0
    %22 = vsyncpa [#allocation4], 0
    // Predicated region
    $region2: #{tpu_custom_call.1} parent=1 // pred_check
      _
    $region3: #{tpu_custom_call.1} parent=1 // pred_check_branch
      %24 = sbr.rel (0) target = $region5
    $region4: #{tpu_custom_call.1} parent=1 // pred_region
      %s26 = ssub.s32 256, 256
      %27 = vsyncadd [#allocation3], %s26
      %s28 = sshll.u32 [#allocation2], 4
      %s29 = int_to_ptr.vmem [resolvable:$true] %s28
      %34 = dma.hbm_to_vmem [thread:$0]  %s0, 256, %s29, [#allocation3], 128, 128, 8
    $region5: #{tpu_custom_call.1} parent=1 // pred_fallthru
      _
    // Predicated region
    $region6: #{tpu_custom_call.1} parent=1 // pred_check
      _
    $region7: #{tpu_custom_call.1} parent=1 // pred_check_branch
      %36 = sbr.rel (0) target = $region9
    $region8: #{tpu_custom_call.1} parent=1 // pred_region
      %s38 = ssub.s32 64, 64
      %39 = vsyncadd [#allocation6], %s38
      %s41 = sshll.u32 [#allocation5], 4
      %s42 = int_to_ptr.vmem [resolvable:$true] %s41
      %44 = dma.hbm_to_vmem [thread:$0]  %s1, 64, %s42, [#allocation6]
    $region9: #{tpu_custom_call.1} parent=1 // pred_fallthru
      _
    // Predicated region
    $region10: #{tpu_custom_call.1} parent=1 // pred_check
      _
    $region11: #{tpu_custom_call.1} parent=1 // pred_check_branch
      %46 = sbr.rel (0) target = $region13
    $region12: #{tpu_custom_call.1} parent=1 // pred_region
      %s48 = ssub.s32 64, 64
      %49 = vsyncadd [#allocation6], %s48
      %s51 = sshll.u32 [#allocation7], 4
      %s52 = int_to_ptr.vmem [resolvable:$true] %s51
      %54 = dma.hbm_to_vmem [thread:$0]  %s2, 64, %s52, [#allocation6]
    $region13: #{tpu_custom_call.1} parent=1 // pred_fallthru
      _
    // Predicated region
    $region14: #{tpu_custom_call.1} parent=1 // pred_check
      _
    $region15: #{tpu_custom_call.1} parent=1 // pred_check_branch
      %56 = sbr.rel (0) target = $region17
    $region16: #{tpu_custom_call.1} parent=1 // pred_region
      %s58 = ssub.s32 2048, 2048
      %59 = vsyncadd [#allocation9], %s58
      %s60 = sshll.u32 [#allocation8], 4
      %s61 = int_to_ptr.vmem [resolvable:$true] %s60
      %66 = dma.hbm_to_vmem [thread:$0]  %s3, 2048, %s61, [#allocation9], 128, 128, 8
    $region17: #{tpu_custom_call.1} parent=1 // pred_fallthru
      _
    // Predicated region
    $region18: #{tpu_custom_call.1} parent=1 // pred_check
      _
    $region19: #{tpu_custom_call.1} parent=1 // pred_check_branch
      %68 = sbr.rel (0) target = $region21
    $region20: #{tpu_custom_call.1} parent=1 // pred_region
      %s70 = ssub.s32 16, 16
      %71 = vsyncadd [#allocation9], %s70
      %s73 = sshll.u32 [#allocation10], 4
      %s74 = int_to_ptr.vmem [resolvable:$true] %s73
      %76 = dma.hbm_to_vmem [thread:$0]  %s4, 16, %s74, [#allocation9]
    $region21: #{tpu_custom_call.1} parent=1 // pred_fallthru
      _
    // Predicated region
    $region22: #{tpu_custom_call.1} parent=1 // pred_check
      _
    $region23: #{tpu_custom_call.1} parent=1 // pred_check_branch
      %78 = sbr.rel (0) target = $region25
    $region24: #{tpu_custom_call.1} parent=1 // pred_region
      %s80 = ssub.s32 2048, 2048
      %81 = vsyncadd [#allocation12], %s80
      %s82 = sshll.u32 [#allocation11], 4
      %s83 = int_to_ptr.vmem [resolvable:$true] %s82
      %88 = dma.hbm_to_vmem [thread:$0]  %s5, 2048, %s83, [#allocation12], 128, 128, 8
    $region25: #{tpu_custom_call.1} parent=1 // pred_fallthru
      _
    // Predicated region
    $region26: #{tpu_custom_call.1} parent=1 // pred_check
      _
    $region27: #{tpu_custom_call.1} parent=1 // pred_check_branch
      %90 = sbr.rel (0) target = $region29
    $region28: #{tpu_custom_call.1} parent=1 // pred_region
      %s92 = ssub.s32 16, 16
      %93 = vsyncadd [#allocation12], %s92
      %s95 = sshll.u32 [#allocation13], 4
      %s96 = int_to_ptr.vmem [resolvable:$true] %s95
      %98 = dma.hbm_to_vmem [thread:$0]  %s6, 16, %s96, [#allocation12]
    $region29: #{tpu_custom_call.1} parent=1 // pred_fallthru
      _
    // Predicated region
    $region30: #{tpu_custom_call.1} parent=1 // pred_check
      _
    $region31: #{tpu_custom_call.1} parent=1 // pred_check_branch
      %100 = sbr.rel (0) target = $region33
    $region32: #{tpu_custom_call.1} parent=1 // pred_region
      %s102 = ssub.s32 2048, 2048
      %103 = vsyncadd [#allocation15], %s102
      %s104 = sshll.u32 [#allocation14], 4
      %s105 = int_to_ptr.vmem [resolvable:$true] %s104
      %110 = dma.hbm_to_vmem [thread:$0]  %s7, 2048, %s105, [#allocation15], 128, 128, 8
    $region33: #{tpu_custom_call.1} parent=1 // pred_fallthru
      _
    // Predicated region
    $region34: #{tpu_custom_call.1} parent=1 // pred_check
      _
    $region35: #{tpu_custom_call.1} parent=1 // pred_check_branch
      %112 = sbr.rel (0) target = $region37
    $region36: #{tpu_custom_call.1} parent=1 // pred_region
      %s114 = ssub.s32 16, 16
      %115 = vsyncadd [#allocation15], %s114
      %s117 = sshll.u32 [#allocation16], 4
      %s118 = int_to_ptr.vmem [resolvable:$true] %s117
      %120 = dma.hbm_to_vmem [thread:$0]  %s8, 16, %s118, [#allocation15]
    $region37: #{tpu_custom_call.1} parent=1 // pred_fallthru
      _
    // Predicated region
    $region38: #{tpu_custom_call.1} parent=1 // pred_check
      _
    $region39: #{tpu_custom_call.1} parent=1 // pred_check_branch
      %122 = sbr.rel (0) target = $region41
    $region40: #{tpu_custom_call.1} parent=1 // pred_region
      %s124 = ssub.s32 2048, 2048
      %125 = vsyncadd [#allocation18], %s124
      %s126 = sshll.u32 [#allocation17], 4
      %s127 = int_to_ptr.vmem [resolvable:$true] %s126
      %132 = dma.hbm_to_vmem [thread:$0]  %s9, 2048, %s127, [#allocation18], 128, 128, 8
    $region41: #{tpu_custom_call.1} parent=1 // pred_fallthru
      _
    // Predicated region
    $region42: #{tpu_custom_call.1} parent=1 // pred_check
      _
    $region43: #{tpu_custom_call.1} parent=1 // pred_check_branch
      %134 = sbr.rel (0) target = $region45
    $region44: #{tpu_custom_call.1} parent=1 // pred_region
      %s136 = ssub.s32 16, 16
      %137 = vsyncadd [#allocation18], %s136
      %s139 = sshll.u32 [#allocation19], 4
      %s140 = int_to_ptr.vmem [resolvable:$true] %s139
      %142 = dma.hbm_to_vmem [thread:$0]  %s10, 16, %s140, [#allocation18]
    $region45: #{tpu_custom_call.1} parent=1 // pred_fallthru
      _
    // Predicated region
    $region46: #{tpu_custom_call.1} parent=1 // pred_check
      _
    $region47: #{tpu_custom_call.1} parent=1 // pred_check_branch
      %144 = sbr.rel (0) target = $region49
    $region48: #{tpu_custom_call.1} parent=1 // pred_region
      %145 = dma.done [#allocation3], 256
    $region49: #{tpu_custom_call.1} parent=1 // pred_fallthru
      _
    // Predicated region
    $region50: #{tpu_custom_call.1} parent=1 // pred_check
      _
    $region51: #{tpu_custom_call.1} parent=1 // pred_check_branch
      %147 = sbr.rel (0) target = $region53
    $region52: #{tpu_custom_call.1} parent=1 // pred_region
      %148 = dma.done [#allocation6], 64
    $region53: #{tpu_custom_call.1} parent=1 // pred_fallthru
      _
    // Predicated region
    $region54: #{tpu_custom_call.1} parent=1 // pred_check
      _
    $region55: #{tpu_custom_call.1} parent=1 // pred_check_branch
      %150 = sbr.rel (0) target = $region57
    $region56: #{tpu_custom_call.1} parent=1 // pred_region
      %151 = dma.done [#allocation6], 64
    $region57: #{tpu_custom_call.1} parent=1 // pred_fallthru
      _
    // Predicated region
    $region58: #{tpu_custom_call.1} parent=1 // pred_check
      _
    $region59: #{tpu_custom_call.1} parent=1 // pred_check_branch
      %153 = sbr.rel (0) target = $region61
    $region60: #{tpu_custom_call.1} parent=1 // pred_region
      %154 = dma.done [#allocation9], 2048
    $region61: #{tpu_custom_call.1} parent=1 // pred_fallthru
      _
    // Predicated region
    $region62: #{tpu_custom_call.1} parent=1 // pred_check
      _
    $region63: #{tpu_custom_call.1} parent=1 // pred_check_branch
      %156 = sbr.rel (0) target = $region65
    $region64: #{tpu_custom_call.1} parent=1 // pred_region
      %157 = dma.done [#allocation9], 16
    $region65: #{tpu_custom_call.1} parent=1 // pred_fallthru
      _
    // Predicated region
    $region66: #{tpu_custom_call.1} parent=1 // pred_check
      _
    $region67: #{tpu_custom_call.1} parent=1 // pred_check_branch
      %159 = sbr.rel (0) target = $region69
    $region68: #{tpu_custom_call.1} parent=1 // pred_region
      %160 = dma.done [#allocation12], 2048
    $region69: #{tpu_custom_call.1} parent=1 // pred_fallthru
      _
    // Predicated region
    $region70: #{tpu_custom_call.1} parent=1 // pred_check
      _
    $region71: #{tpu_custom_call.1} parent=1 // pred_check_branch
      %162 = sbr.rel (0) target = $region73
    $region72: #{tpu_custom_call.1} parent=1 // pred_region
      %163 = dma.done [#allocation12], 16
    $region73: #{tpu_custom_call.1} parent=1 // pred_fallthru
      _
    // Predicated region
    $region74: #{tpu_custom_call.1} parent=1 // pred_check
      _
    $region75: #{tpu_custom_call.1} parent=1 // pred_check_branch
      %165 = sbr.rel (0) target = $region77
    $region76: #{tpu_custom_call.1} parent=1 // pred_region
      %166 = dma.done [#allocation15], 2048
    $region77: #{tpu_custom_call.1} parent=1 // pred_fallthru
      _
    // Predicated region
    $region78: #{tpu_custom_call.1} parent=1 // pred_check
      _
    $region79: #{tpu_custom_call.1} parent=1 // pred_check_branch
      %168 = sbr.rel (0) target = $region81
    $region80: #{tpu_custom_call.1} parent=1 // pred_region
      %169 = dma.done [#allocation15], 16
    $region81: #{tpu_custom_call.1} parent=1 // pred_fallthru
      _
    // Predicated region
    $region82: #{tpu_custom_call.1} parent=1 // pred_check
      _
    $region83: #{tpu_custom_call.1} parent=1 // pred_check_branch
      %171 = sbr.rel (0) target = $region85
    $region84: #{tpu_custom_call.1} parent=1 // pred_region
      %172 = dma.done [#allocation18], 2048
    $region85: #{tpu_custom_call.1} parent=1 // pred_fallthru
      _
    // Predicated region
    $region86: #{tpu_custom_call.1} parent=1 // pred_check
      _
    $region87: #{tpu_custom_call.1} parent=1 // pred_check_branch
      %174 = sbr.rel (0) target = $region89
    $region88: #{tpu_custom_call.1} parent=1 // pred_region
      %175 = dma.done [#allocation18], 16
    $region89: #{tpu_custom_call.1} parent=1 // pred_fallthru
      _
    %v176 = vld [vmem:[#allocation2] sm:$0xff]
    %v177 = vld [vmem:[#allocation2 + $0x8] sm:$0xff]
    %v178 = vld [vmem:[#allocation5] sm:$0x7]
    %v179 = vld [vmem:[#allocation7] sm:$0x7]
    %181 = vset.pattern.permute.xlu0 0
    %182 = vperm.xlu0 %181, %v176
    %v183 = vpop.permute.xlu0 %182
    %186 = vset.pattern.permute.xlu0 0
    %187 = vperm.xlu0 %186, %v177
    %v188 = vpop.permute.xlu0 %187
    %v190 = vlaneseq
    %v191 = vshrl.u32 %v190, 7
    %v192 = vsub.s32 0, %v191
    %v193 = vrot.slane %v178, %v192
    %v194 = vmul.f32 %v183, %v193
    %v195 = vmul.f32 %v188, %v193
    %v196 = vlaneseq
    %v197 = vshrl.u32 %v196, 7
    %v198 = vsub.s32 0, %v197
    %v199 = vrot.slane %v179, %v198
    %v200 = vmul.f32 %v183, %v199
    %v201 = vmul.f32 %v188, %v199
    %202 = vset.pattern.permute.xlu0 1
    %203 = vperm.xlu0 %202, %v176
    %v204 = vpop.permute.xlu0 %203
    %206 = vset.pattern.permute.xlu0 1
    %207 = vperm.xlu0 %206, %v177
    %v208 = vpop.permute.xlu0 %207
    %v210 = vlaneseq
    %v211 = vshrl.u32 %v210, 7
    %v212 = vsub.s32 1, %v211
    %v213 = vrot.slane %v178, %v212
    %v214 = vmul.f32 %v204, %v213
    %v215 = vmul.f32 %v208, %v213
    %v216 = vadd.f32 %v194, %v214
    %v217 = vadd.f32 %v195, %v215
    %v218 = vlaneseq
    %v219 = vshrl.u32 %v218, 7
    %v220 = vsub.s32 1, %v219
    %v221 = vrot.slane %v179, %v220
    %v222 = vmul.f32 %v204, %v221
    %v223 = vmul.f32 %v208, %v221
    %v224 = vadd.f32 %v200, %v222
    %v225 = vadd.f32 %v201, %v223
    %226 = vset.pattern.permute.xlu0 2
    %227 = vperm.xlu0 %226, %v176
    %v228 = vpop.permute.xlu0 %227
    %230 = vset.pattern.permute.xlu0 2
    %231 = vperm.xlu0 %230, %v177
    %v232 = vpop.permute.xlu0 %231
    %v234 = vlaneseq
    %v235 = vshrl.u32 %v234, 7
    %v236 = vsub.s32 2, %v235
    %v237 = vrot.slane %v178, %v236
    %v238 = vmul.f32 %v228, %v237
    %v239 = vmul.f32 %v232, %v237
    %v240 = vadd.f32 %v216, %v238
    %v241 = vadd.f32 %v217, %v239
    %v242 = vlaneseq
    %v243 = vshrl.u32 %v242, 7
    %v244 = vsub.s32 2, %v243
    %v245 = vrot.slane %v179, %v244
    %v246 = vmul.f32 %v228, %v245
    %v247 = vmul.f32 %v232, %v245
    %v248 = vadd.f32 %v224, %v246
    %v249 = vadd.f32 %v225, %v247
    %v250 = vsub.f32 0.0, %v248
    %v251 = vsub.f32 0.0, %v249
    %v252 = vmul.f32 %v250, 1.442695
    %v253 = vpow.pop %v252
    %v254 = vmul.f32 %v251, 1.442695
    %v255 = vpow.pop %v254
    %v256 = vand.u32 2147483647, %v240
    %vm257 = vcmp.le.f32.partialorder %v256, 0.7853982
    %vm258 = vcmp.lt.s32.totalorder %v240, 0
    %v259 = vand.u32 %v240, 2139095040
    %v260 = vshrl.u32 %v259, 23
    %v261 = vsub.s32 %v260, 127
    %v262 = vand.u32 2147483647, %v240
    %v263 = vand.u32 %v262, 8388607
    %v264 = vor.u32 %v263, 8388608
    %v265 = vsub.s32 0, %v264
    %v266 = vadd.s32 %v261, 1
    %vm267 = vcmp.gt.s32.totalorder %v266, 0
    %v268 = vsel %vm267, %v266, 0
    %v269 = vshrl.u32 %v268, 5
    %v270 = vand.u32 %v268, 31
    %v271 = vsub.s32 32, %v270
    %v272 = vshrl.u32 683565275, %v271
    %v273 = vshll.u32 683565275, %v270
    %v274 = vshrl.u32 2475754826, %v271
    %v275 = vor.u32 %v273, %v274
    %v276 = vshll.u32 2475754826, %v270
    %v277 = vshrl.u32 2131351028, %v271
    %v278 = vor.u32 %v276, %v277
    %v279 = vshll.u32 2131351028, %v270
    %v280 = vshrl.u32 2102212464, %v271
    %v281 = vor.u32 %v279, %v280
    %v282 = vshll.u32 2102212464, %v270
    %v283 = vshrl.u32 920167782, %v271
    %v284 = vor.u32 %v282, %v283
    %v285 = vshll.u32 920167782, %v270
    %v286 = vshrl.u32 1326507024, %v271
    %v287 = vor.u32 %v285, %v286
    %vm288 = vcmp.lt.s32.totalorder %v269, 1
    %vm289 = vcmp.lt.s32.totalorder %v269, 2
    %vm290 = vcmp.lt.s32.totalorder %v269, 3
    %vm291 = vcmp.lt.s32.totalorder %v269, 4
    %v292 = vsel %vm288, %v272, %v275
    %v293 = vsel %vm291, %v281, 2102212464
    %v294 = vsel %vm290, %v278, %v293
    %v295 = vsel %vm289, %v292, %v294
    %v296 = vsel %vm288, %v275, %v278
    %v297 = vsel %vm291, %v284, 920167782
    %v298 = vsel %vm290, %v281, %v297
    %v299 = vsel %vm289, %v296, %v298
    %v300 = vsel %vm288, %v278, %v281
    %v301 = vsel %vm291, %v287, 1326507024
    %v302 = vsel %vm290, %v284, %v301
    %v303 = vsel %vm289, %v300, %v302
    %v304 = vshll.u32 %v264, 8
    %v305 = vmul.u32.u64.compose %v304, %v303
    %v306 = vextract.low.u32 %v305
    %v307 = vextract.high.u32 %v305
    %v308 = vmul.u32.u64.compose %v304, %v299
    %v309 = vextract.low.u32 %v308
    %v310 = vextract.high.u32 %v308
    %v311 = vmul.u32 %v304, %v295
    %v312 = vadd.s32 %v307, %v309
    %vm313 = vc.u32 %v307, %v309
    %v314 = vadd.s32 %v310, 1
    %v315 = vsel %vm313, %v314, %v310
    %v316 = vadd.s32 %v311, %v315
    %v317 = vadd.s32 %v316, 536870912
    %v318 = vshrl.u32 %v317, 30
    %v319 = vshll.u32 %v318, 30
    %v320 = vsub.s32 %v316, %v319
    %vm321 = vcmp.lt.s32.totalorder %v320, 0
    %v322 = vsub.s32 0, %v320
    %v323 = vsel %vm321, %v322, %v320
    %v324 = vclz %v323
    %v325 = vsub.s32 %v324, 2
    %vm326 = vcmp.gt.s32.totalorder 0, %v325
    %v327 = vsel %vm326, 0, %v325
    %v328 = vsub.s32 32, %v327
    %v329 = vshll.u32 %v320, %v327
    %v330 = vshrl.u32 %v312, %v328
    %v331 = vor.u32 %v329, %v330
    %v332 = vsub.s32 4294967266, %v327
    %v333 = vadd.s32 %v332, 127
    %v334 = vshll.u32 %v333, 23
    %v335 = vor.u32 4788187, %v334
    %v336 = vand.u32 2147483647, %v335
    %v338 = vcvt.s32.f32 %v331
    %v339 = vmul.f32 %v338, %v336
    %v340 = vxor.u32 %v339, 2147483648
    %v341 = vsel %vm258, %v340, %v339
    %v342 = vsub.s32 4, %v318
    %v343 = vsel %vm258, %v342, %v318
    %v344 = vsel %vm257, %v240, %v341
    %v345 = vsel %vm257, 0, %v343
    %v346 = vcosq.f32.pop %v344
    %v347 = vsinq.f32.pop %v344
    %vm348 = vweird.f32 %v240
    %v349 = vand.u32 %v345, 3
    %vm350 = vcmp.lt.s32.totalorder %v349, 2
    %vm351 = vcmp.eq.s32.totalorder %v349, 0
    %v352 = vxor.u32 %v347, 2147483648
    %v353 = vsel %vm351, %v346, %v352
    %vm354 = vcmp.eq.s32.totalorder %v349, 2
    %v355 = vxor.u32 %v346, 2147483648
    %v356 = vsel %vm354, %v355, %v347
    %v357 = vsel %vm350, %v353, %v356
    %v358 = vsel %vm348, nan, %v357
    %v359 = vand.u32 2147483647, %v241
    %vm360 = vcmp.le.f32.partialorder %v359, 0.7853982
    %vm361 = vcmp.lt.s32.totalorder %v241, 0
    %v362 = vand.u32 %v241, 2139095040
    %v363 = vshrl.u32 %v362, 23
    %v364 = vsub.s32 %v363, 127
    %v365 = vand.u32 2147483647, %v241
    %v366 = vand.u32 %v365, 8388607
    %v367 = vor.u32 %v366, 8388608
    %v368 = vsub.s32 0, %v367
    %v369 = vadd.s32 %v364, 1
    %vm370 = vcmp.gt.s32.totalorder %v369, 0
    %v371 = vsel %vm370, %v369, 0
    %v372 = vshrl.u32 %v371, 5
    %v373 = vand.u32 %v371, 31
    %v374 = vsub.s32 32, %v373
    %v375 = vshrl.u32 683565275, %v374
    %v376 = vshll.u32 683565275, %v373
    %v377 = vshrl.u32 2475754826, %v374
    %v378 = vor.u32 %v376, %v377
    %v379 = vshll.u32 2475754826, %v373
    %v380 = vshrl.u32 2131351028, %v374
    %v381 = vor.u32 %v379, %v380
    %v382 = vshll.u32 2131351028, %v373
    %v383 = vshrl.u32 2102212464, %v374
    %v384 = vor.u32 %v382, %v383
    %v385 = vshll.u32 2102212464, %v373
    %v386 = vshrl.u32 920167782, %v374
    %v387 = vor.u32 %v385, %v386
    %v388 = vshll.u32 920167782, %v373
    %v389 = vshrl.u32 1326507024, %v374
    %v390 = vor.u32 %v388, %v389
    %vm391 = vcmp.lt.s32.totalorder %v372, 1
    %vm392 = vcmp.lt.s32.totalorder %v372, 2
    %vm393 = vcmp.lt.s32.totalorder %v372, 3
    %vm394 = vcmp.lt.s32.totalorder %v372, 4
    %v395 = vsel %vm391, %v375, %v378
    %v396 = vsel %vm394, %v384, 2102212464
    %v397 = vsel %vm393, %v381, %v396
    %v398 = vsel %vm392, %v395, %v397
    %v399 = vsel %vm391, %v378, %v381
    %v400 = vsel %vm394, %v387, 920167782
    %v401 = vsel %vm393, %v384, %v400
    %v402 = vsel %vm392, %v399, %v401
    %v403 = vsel %vm391, %v381, %v384
    %v404 = vsel %vm394, %v390, 1326507024
    %v405 = vsel %vm393, %v387, %v404
    %v406 = vsel %vm392, %v403, %v405
    %v407 = vshll.u32 %v367, 8
    %v408 = vmul.u32.u64.compose %v407, %v406
    %v409 = vextract.low.u32 %v408
    %v410 = vextract.high.u32 %v408
    %v411 = vmul.u32.u64.compose %v407, %v402
    %v412 = vextract.low.u32 %v411
    %v413 = vextract.high.u32 %v411
    %v414 = vmul.u32 %v407, %v398
    %v415 = vadd.s32 %v410, %v412
    %vm416 = vc.u32 %v410, %v412
    %v417 = vadd.s32 %v413, 1
    %v418 = vsel %vm416, %v417, %v413
    %v419 = vadd.s32 %v414, %v418
    %v420 = vadd.s32 %v419, 536870912
    %v421 = vshrl.u32 %v420, 30
    %v422 = vshll.u32 %v421, 30
    %v423 = vsub.s32 %v419, %v422
    %vm424 = vcmp.lt.s32.totalorder %v423, 0
    %v425 = vsub.s32 0, %v423
    %v426 = vsel %vm424, %v425, %v423
    %v427 = vclz %v426
    %v428 = vsub.s32 %v427, 2
    %vm429 = vcmp.gt.s32.totalorder 0, %v428
    %v430 = vsel %vm429, 0, %v428
    %v431 = vsub.s32 32, %v430
    %v432 = vshll.u32 %v423, %v430
    %v433 = vshrl.u32 %v415, %v431
    %v434 = vor.u32 %v432, %v433
    %v435 = vsub.s32 4294967266, %v430
    %v436 = vadd.s32 %v435, 127
    %v437 = vshll.u32 %v436, 23
    %v438 = vor.u32 4788187, %v437
    %v439 = vand.u32 2147483647, %v438
    %v441 = vcvt.s32.f32 %v434
    %v442 = vmul.f32 %v441, %v439
    %v443 = vxor.u32 %v442, 2147483648
    %v444 = vsel %vm361, %v443, %v442
    %v445 = vsub.s32 4, %v421
    %v446 = vsel %vm361, %v445, %v421
    %v447 = vsel %vm360, %v241, %v444
    %v448 = vsel %vm360, 0, %v446
    %v449 = vcosq.f32.pop %v447
    %v450 = vsinq.f32.pop %v447
    %vm451 = vweird.f32 %v241
    %v452 = vand.u32 %v448, 3
    %vm453 = vcmp.lt.s32.totalorder %v452, 2
    %vm454 = vcmp.eq.s32.totalorder %v452, 0
    %v455 = vxor.u32 %v450, 2147483648
    %v456 = vsel %vm454, %v449, %v455
    %vm457 = vcmp.eq.s32.totalorder %v452, 2
    %v458 = vxor.u32 %v449, 2147483648
    %v459 = vsel %vm457, %v458, %v450
    %v460 = vsel %vm453, %v456, %v459
    %v461 = vsel %vm451, nan, %v460
    %v462 = vmul.f32 %v253, %v358
    %v463 = vmul.f32 %v255, %v461
    %v464 = vld [vmem:[#allocation8] sm:$0xff]
    %v465 = vld [vmem:[#allocation8 + $0x8] sm:$0xff]
    %v466 = vld [vmem:[#allocation8 + $0x10] sm:$0xff]
    %v467 = vld [vmem:[#allocation8 + $0x18] sm:$0xff]
    %v468 = vld [vmem:[#allocation8 + $0x20] sm:$0xff]
    %v469 = vld [vmem:[#allocation8 + $0x28] sm:$0xff]
    %v470 = vld [vmem:[#allocation8 + $0x30] sm:$0xff]
    %v471 = vld [vmem:[#allocation8 + $0x38] sm:$0xff]
    %v472 = vld [vmem:[#allocation8 + $0x40] sm:$0xff]
    %v473 = vld [vmem:[#allocation8 + $0x48] sm:$0xff]
    %v474 = vld [vmem:[#allocation8 + $0x50] sm:$0xff]
    %v475 = vld [vmem:[#allocation8 + $0x58] sm:$0xff]
    %v476 = vld [vmem:[#allocation8 + $0x60] sm:$0xff]
    %v477 = vld [vmem:[#allocation8 + $0x68] sm:$0xff]
    %v478 = vld [vmem:[#allocation8 + $0x70] sm:$0xff]
    %v479 = vld [vmem:[#allocation8 + $0x78] sm:$0xff]
    %v480 = vld [vmem:[#allocation10] sm:$0x1]
    %v482 = vlaneseq
    %v483 = vshrl.u32 %v482, 7
    %v484 = vsub.s32 0, %v483
    %v485 = vrot.slane %v480, %v484
    %487 = vmatprep.subr.mxu0 0.0
    %488 = vmatpush1.msra.mxu0 %v464
    %489 = vmatprep.subr.mxu0 0.0
    %490 = vmatpush1.msra.mxu0 %v465
    %491 = vmatprep.subr.mxu0 0.0
    %492 = vmatpush1.msra.mxu0 %v466
    %493 = vmatprep.subr.mxu0 0.0
    %494 = vmatpush1.msra.mxu0 %v467
    %495 = vmatprep.subr.mxu0 0.0
    %496 = vmatpush1.msra.mxu0 %v468
    %497 = vmatprep.subr.mxu0 0.0
    %498 = vmatpush1.msra.mxu0 %v469
    %499 = vmatprep.subr.mxu0 0.0
    %500 = vmatpush1.msra.mxu0 %v470
    %501 = vmatprep.subr.mxu0 0.0
    %502 = vmatpush1.msra.mxu0 %v471
    %503 = vmatprep.subr.mxu0 0.0
    %504 = vmatpush1.msra.mxu0 %v472
    %505 = vmatprep.subr.mxu0 0.0
    %506 = vmatpush1.msra.mxu0 %v473
    %507 = vmatprep.subr.mxu0 0.0
    %508 = vmatpush1.msra.mxu0 %v474
    %509 = vmatprep.subr.mxu0 0.0
    %510 = vmatpush1.msra.mxu0 %v475
    %511 = vmatprep.subr.mxu0 0.0
    %512 = vmatpush1.msra.mxu0 %v476
    %513 = vmatprep.subr.mxu0 0.0
    %514 = vmatpush1.msra.mxu0 %v477
    %515 = vmatprep.subr.mxu0 0.0
    %516 = vmatpush1.msra.mxu0 %v478
    %517 = vmatprep.subr.mxu0 0.0
    %518 = vmatpush1.msra.mxu0 %v479
    %519 = vmatprep.subr.mxu0 0.0
    %520 = vmatpush1.msra.mxu0 0.0
    %521 = vmatprep.subr.mxu0 0.0
    %522 = vmatpush1.msra.mxu0 0.0
    %523 = vmatprep.subr.mxu0 0.0
    %524 = vmatpush1.msra.mxu0 0.0
    %525 = vmatprep.subr.mxu0 0.0
    %526 = vmatpush1.msra.mxu0 0.0
    %527 = vmatprep.subr.mxu0 0.0
    %528 = vmatpush1.msra.mxu0 0.0
    %529 = vmatprep.subr.mxu0 0.0
    %530 = vmatpush1.msra.mxu0 0.0
    %531 = vmatprep.subr.mxu0 0.0
    %532 = vmatpush1.msra.mxu0 0.0
    %533 = vmatprep.subr.mxu0 0.0
    %534 = vmatpush1.msra.mxu0 0.0
    %535 = vmatprep.subr.mxu0 0.0
    %536 = vmatpush1.msra.mxu0 0.0
    %537 = vmatprep.subr.mxu0 0.0
    %538 = vmatpush1.msra.mxu0 0.0
    %539 = vmatprep.subr.mxu0 0.0
    %540 = vmatpush1.msra.mxu0 0.0
    %541 = vmatprep.subr.mxu0 0.0
    %542 = vmatpush1.msra.mxu0 0.0
    %543 = vmatprep.subr.mxu0 0.0
    %544 = vmatpush1.msra.mxu0 0.0
    %545 = vmatprep.subr.mxu0 0.0
    %546 = vmatpush1.msra.mxu0 0.0
    %547 = vmatprep.subr.mxu0 0.0
    %548 = vmatpush1.msra.mxu0 0.0
    %549 = vmatprep.subr.mxu0 0.0
    %550 = vmatpush1.msra.mxu0 0.0
    %551 = vmatprep.mubr.f32.mxu0 0.0
    %552 = vmatmul.mubr.f32.gmra.mrb[0].mxu0 %v462
    %v553 = vpop.f32.mrb[0].mxu0
    %v554 = vadd.f32 %v485, %v553
    %v555 = vpop.f32.mrb[0].mxu0
    %556 = vmatprep.mubr.f32.mxu0 0.0
    %557 = vmatmul.mubr.f32.gmra.mrb[0].mxu0 %v463
    %v558 = vpop.f32.mrb[0].mxu0
    %v559 = vadd.f32 %v485, %v558
    %v560 = vpop.f32.mrb[0].mxu0
    %561 = vdwg.mxu0
    %v562 = vand.u32 2147483647, %v554
    %vm563 = vcmp.le.f32.partialorder %v562, 0.7853982
    %vm564 = vcmp.lt.s32.totalorder %v554, 0
    %v565 = vand.u32 %v554, 2139095040
    %v566 = vshrl.u32 %v565, 23
    %v567 = vsub.s32 %v566, 127
    %v568 = vand.u32 2147483647, %v554
    %v569 = vand.u32 %v568, 8388607
    %v570 = vor.u32 %v569, 8388608
    %v571 = vsub.s32 0, %v570
    %v572 = vadd.s32 %v567, 1
    %vm573 = vcmp.gt.s32.totalorder %v572, 0
    %v574 = vsel %vm573, %v572, 0
    %v575 = vshrl.u32 %v574, 5
    %v576 = vand.u32 %v574, 31
    %v577 = vsub.s32 32, %v576
    %v578 = vshrl.u32 683565275, %v577
    %v579 = vshll.u32 683565275, %v576
    %v580 = vshrl.u32 2475754826, %v577
    %v581 = vor.u32 %v579, %v580
    %v582 = vshll.u32 2475754826, %v576
    %v583 = vshrl.u32 2131351028, %v577
    %v584 = vor.u32 %v582, %v583
    %v585 = vshll.u32 2131351028, %v576
    %v586 = vshrl.u32 2102212464, %v577
    %v587 = vor.u32 %v585, %v586
    %v588 = vshll.u32 2102212464, %v576
    %v589 = vshrl.u32 920167782, %v577
    %v590 = vor.u32 %v588, %v589
    %v591 = vshll.u32 920167782, %v576
    %v592 = vshrl.u32 1326507024, %v577
    %v593 = vor.u32 %v591, %v592
    %vm594 = vcmp.lt.s32.totalorder %v575, 1
    %vm595 = vcmp.lt.s32.totalorder %v575, 2
    %vm596 = vcmp.lt.s32.totalorder %v575, 3
    %vm597 = vcmp.lt.s32.totalorder %v575, 4
    %v598 = vsel %vm594, %v578, %v581
    %v599 = vsel %vm597, %v587, 2102212464
    %v600 = vsel %vm596, %v584, %v599
    %v601 = vsel %vm595, %v598, %v600
    %v602 = vsel %vm594, %v581, %v584
    %v603 = vsel %vm597, %v590, 920167782
    %v604 = vsel %vm596, %v587, %v603
    %v605 = vsel %vm595, %v602, %v604
    %v606 = vsel %vm594, %v584, %v587
    %v607 = vsel %vm597, %v593, 1326507024
    %v608 = vsel %vm596, %v590, %v607
    %v609 = vsel %vm595, %v606, %v608
    %v610 = vshll.u32 %v570, 8
    %v611 = vmul.u32.u64.compose %v610, %v609
    %v612 = vextract.low.u32 %v611
    %v613 = vextract.high.u32 %v611
    %v614 = vmul.u32.u64.compose %v610, %v605
    %v615 = vextract.low.u32 %v614
    %v616 = vextract.high.u32 %v614
    %v617 = vmul.u32 %v610, %v601
    %v618 = vadd.s32 %v613, %v615
    %vm619 = vc.u32 %v613, %v615
    %v620 = vadd.s32 %v616, 1
    %v621 = vsel %vm619, %v620, %v616
    %v622 = vadd.s32 %v617, %v621
    %v623 = vadd.s32 %v622, 536870912
    %v624 = vshrl.u32 %v623, 30
    %v625 = vshll.u32 %v624, 30
    %v626 = vsub.s32 %v622, %v625
    %vm627 = vcmp.lt.s32.totalorder %v626, 0
    %v628 = vsub.s32 0, %v626
    %v629 = vsel %vm627, %v628, %v626
    %v630 = vclz %v629
    %v631 = vsub.s32 %v630, 2
    %vm632 = vcmp.gt.s32.totalorder 0, %v631
    %v633 = vsel %vm632, 0, %v631
    %v634 = vsub.s32 32, %v633
    %v635 = vshll.u32 %v626, %v633
    %v636 = vshrl.u32 %v618, %v634
    %v637 = vor.u32 %v635, %v636
    %v638 = vsub.s32 4294967266, %v633
    %v639 = vadd.s32 %v638, 127
    %v640 = vshll.u32 %v639, 23
    %v641 = vor.u32 4788187, %v640
    %v642 = vand.u32 2147483647, %v641
    %v644 = vcvt.s32.f32 %v637
    %v645 = vmul.f32 %v644, %v642
    %v646 = vxor.u32 %v645, 2147483648
    %v647 = vsel %vm564, %v646, %v645
    %v648 = vsub.s32 4, %v624
    %v649 = vsel %vm564, %v648, %v624
    %v650 = vsel %vm563, %v554, %v647
    %v651 = vsel %vm563, 0, %v649
    %v652 = vcosq.f32.pop %v650
    %v653 = vsinq.f32.pop %v650
    %vm654 = vweird.f32 %v554
    %v655 = vadd.s32 %v651, 3
    %v656 = vand.u32 %v655, 3
    %vm657 = vcmp.lt.s32.totalorder %v656, 2
    %vm658 = vcmp.eq.s32.totalorder %v656, 0
    %v659 = vxor.u32 %v653, 2147483648
    %v660 = vsel %vm658, %v652, %v659
    %vm661 = vcmp.eq.s32.totalorder %v656, 2
    %v662 = vxor.u32 %v652, 2147483648
    %v663 = vsel %vm661, %v662, %v653
    %v664 = vsel %vm657, %v660, %v663
    %v665 = vsel %vm654, nan, %v664
    %v666 = vand.u32 2147483647, %v559
    %vm667 = vcmp.le.f32.partialorder %v666, 0.7853982
    %vm668 = vcmp.lt.s32.totalorder %v559, 0
    %v669 = vand.u32 %v559, 2139095040
    %v670 = vshrl.u32 %v669, 23
    %v671 = vsub.s32 %v670, 127
    %v672 = vand.u32 2147483647, %v559
    %v673 = vand.u32 %v672, 8388607
    %v674 = vor.u32 %v673, 8388608
    %v675 = vsub.s32 0, %v674
    %v676 = vadd.s32 %v671, 1
    %vm677 = vcmp.gt.s32.totalorder %v676, 0
    %v678 = vsel %vm677, %v676, 0
    %v679 = vshrl.u32 %v678, 5
    %v680 = vand.u32 %v678, 31
    %v681 = vsub.s32 32, %v680
    %v682 = vshrl.u32 683565275, %v681
    %v683 = vshll.u32 683565275, %v680
    %v684 = vshrl.u32 2475754826, %v681
    %v685 = vor.u32 %v683, %v684
    %v686 = vshll.u32 2475754826, %v680
    %v687 = vshrl.u32 2131351028, %v681
    %v688 = vor.u32 %v686, %v687
    %v689 = vshll.u32 2131351028, %v680
    %v690 = vshrl.u32 2102212464, %v681
    %v691 = vor.u32 %v689, %v690
    %v692 = vshll.u32 2102212464, %v680
    %v693 = vshrl.u32 920167782, %v681
    %v694 = vor.u32 %v692, %v693
    %v695 = vshll.u32 920167782, %v680
    %v696 = vshrl.u32 1326507024, %v681
    %v697 = vor.u32 %v695, %v696
    %vm698 = vcmp.lt.s32.totalorder %v679, 1
    %vm699 = vcmp.lt.s32.totalorder %v679, 2
    %vm700 = vcmp.lt.s32.totalorder %v679, 3
    %vm701 = vcmp.lt.s32.totalorder %v679, 4
    %v702 = vsel %vm698, %v682, %v685
    %v703 = vsel %vm701, %v691, 2102212464
    %v704 = vsel %vm700, %v688, %v703
    %v705 = vsel %vm699, %v702, %v704
    %v706 = vsel %vm698, %v685, %v688
    %v707 = vsel %vm701, %v694, 920167782
    %v708 = vsel %vm700, %v691, %v707
    %v709 = vsel %vm699, %v706, %v708
    %v710 = vsel %vm698, %v688, %v691
    %v711 = vsel %vm701, %v697, 1326507024
    %v712 = vsel %vm700, %v694, %v711
    %v713 = vsel %vm699, %v710, %v712
    %v714 = vshll.u32 %v674, 8
    %v715 = vmul.u32.u64.compose %v714, %v713
    %v716 = vextract.low.u32 %v715
    %v717 = vextract.high.u32 %v715
    %v718 = vmul.u32.u64.compose %v714, %v709
    %v719 = vextract.low.u32 %v718
    %v720 = vextract.high.u32 %v718
    %v721 = vmul.u32 %v714, %v705
    %v722 = vadd.s32 %v717, %v719
    %vm723 = vc.u32 %v717, %v719
    %v724 = vadd.s32 %v720, 1
    %v725 = vsel %vm723, %v724, %v720
    %v726 = vadd.s32 %v721, %v725
    %v727 = vadd.s32 %v726, 536870912
    %v728 = vshrl.u32 %v727, 30
    %v729 = vshll.u32 %v728, 30
    %v730 = vsub.s32 %v726, %v729
    %vm731 = vcmp.lt.s32.totalorder %v730, 0
    %v732 = vsub.s32 0, %v730
    %v733 = vsel %vm731, %v732, %v730
    %v734 = vclz %v733
    %v735 = vsub.s32 %v734, 2
    %vm736 = vcmp.gt.s32.totalorder 0, %v735
    %v737 = vsel %vm736, 0, %v735
    %v738 = vsub.s32 32, %v737
    %v739 = vshll.u32 %v730, %v737
    %v740 = vshrl.u32 %v722, %v738
    %v741 = vor.u32 %v739, %v740
    %v742 = vsub.s32 4294967266, %v737
    %v743 = vadd.s32 %v742, 127
    %v744 = vshll.u32 %v743, 23
    %v745 = vor.u32 4788187, %v744
    %v746 = vand.u32 2147483647, %v745
    %v748 = vcvt.s32.f32 %v741
    %v749 = vmul.f32 %v748, %v746
    %v750 = vxor.u32 %v749, 2147483648
    %v751 = vsel %vm668, %v750, %v749
    %v752 = vsub.s32 4, %v728
    %v753 = vsel %vm668, %v752, %v728
    %v754 = vsel %vm667, %v559, %v751
    %v755 = vsel %vm667, 0, %v753
    %v756 = vcosq.f32.pop %v754
    %v757 = vsinq.f32.pop %v754
    %vm758 = vweird.f32 %v559
    %v759 = vadd.s32 %v755, 3
    %v760 = vand.u32 %v759, 3
    %vm761 = vcmp.lt.s32.totalorder %v760, 2
    %vm762 = vcmp.eq.s32.totalorder %v760, 0
    %v763 = vxor.u32 %v757, 2147483648
    %v764 = vsel %vm762, %v756, %v763
    %vm765 = vcmp.eq.s32.totalorder %v760, 2
    %v766 = vxor.u32 %v756, 2147483648
    %v767 = vsel %vm765, %v766, %v757
    %v768 = vsel %vm761, %v764, %v767
    %v769 = vsel %vm758, nan, %v768
    %v770 = vld [vmem:[#allocation11] sm:$0xff]
    %v771 = vld [vmem:[#allocation11 + $0x8] sm:$0xff]
    %v772 = vld [vmem:[#allocation11 + $0x10] sm:$0xff]
    %v773 = vld [vmem:[#allocation11 + $0x18] sm:$0xff]
    %v774 = vld [vmem:[#allocation11 + $0x20] sm:$0xff]
    %v775 = vld [vmem:[#allocation11 + $0x28] sm:$0xff]
    %v776 = vld [vmem:[#allocation11 + $0x30] sm:$0xff]
    %v777 = vld [vmem:[#allocation11 + $0x38] sm:$0xff]
    %v778 = vld [vmem:[#allocation11 + $0x40] sm:$0xff]
    %v779 = vld [vmem:[#allocation11 + $0x48] sm:$0xff]
    %v780 = vld [vmem:[#allocation11 + $0x50] sm:$0xff]
    %v781 = vld [vmem:[#allocation11 + $0x58] sm:$0xff]
    %v782 = vld [vmem:[#allocation11 + $0x60] sm:$0xff]
    %v783 = vld [vmem:[#allocation11 + $0x68] sm:$0xff]
    %v784 = vld [vmem:[#allocation11 + $0x70] sm:$0xff]
    %v785 = vld [vmem:[#allocation11 + $0x78] sm:$0xff]
    %v786 = vld [vmem:[#allocation13] sm:$0x1]
    %v788 = vlaneseq
    %v789 = vshrl.u32 %v788, 7
    %v790 = vsub.s32 0, %v789
    %v791 = vrot.slane %v786, %v790
    %793 = vmatprep.subr.mxu0 0.0
    %794 = vmatpush1.msra.mxu0 %v770
    %795 = vmatprep.subr.mxu0 0.0
    %796 = vmatpush1.msra.mxu0 %v771
    %797 = vmatprep.subr.mxu0 0.0
    %798 = vmatpush1.msra.mxu0 %v772
    %799 = vmatprep.subr.mxu0 0.0
    %800 = vmatpush1.msra.mxu0 %v773
    %801 = vmatprep.subr.mxu0 0.0
    %802 = vmatpush1.msra.mxu0 %v774
    %803 = vmatprep.subr.mxu0 0.0
    %804 = vmatpush1.msra.mxu0 %v775
    %805 = vmatprep.subr.mxu0 0.0
    %806 = vmatpush1.msra.mxu0 %v776
    %807 = vmatprep.subr.mxu0 0.0
    %808 = vmatpush1.msra.mxu0 %v777
    %809 = vmatprep.subr.mxu0 0.0
    %810 = vmatpush1.msra.mxu0 %v778
    %811 = vmatprep.subr.mxu0 0.0
    %812 = vmatpush1.msra.mxu0 %v779
    %813 = vmatprep.subr.mxu0 0.0
    %814 = vmatpush1.msra.mxu0 %v780
    %815 = vmatprep.subr.mxu0 0.0
    %816 = vmatpush1.msra.mxu0 %v781
    %817 = vmatprep.subr.mxu0 0.0
    %818 = vmatpush1.msra.mxu0 %v782
    %819 = vmatprep.subr.mxu0 0.0
    %820 = vmatpush1.msra.mxu0 %v783
    %821 = vmatprep.subr.mxu0 0.0
    %822 = vmatpush1.msra.mxu0 %v784
    %823 = vmatprep.subr.mxu0 0.0
    %824 = vmatpush1.msra.mxu0 %v785
    %825 = vmatprep.subr.mxu0 0.0
    %826 = vmatpush1.msra.mxu0 0.0
    %827 = vmatprep.subr.mxu0 0.0
    %828 = vmatpush1.msra.mxu0 0.0
    %829 = vmatprep.subr.mxu0 0.0
    %830 = vmatpush1.msra.mxu0 0.0
    %831 = vmatprep.subr.mxu0 0.0
    %832 = vmatpush1.msra.mxu0 0.0
    %833 = vmatprep.subr.mxu0 0.0
    %834 = vmatpush1.msra.mxu0 0.0
    %835 = vmatprep.subr.mxu0 0.0
    %836 = vmatpush1.msra.mxu0 0.0
    %837 = vmatprep.subr.mxu0 0.0
    %838 = vmatpush1.msra.mxu0 0.0
    %839 = vmatprep.subr.mxu0 0.0
    %840 = vmatpush1.msra.mxu0 0.0
    %841 = vmatprep.subr.mxu0 0.0
    %842 = vmatpush1.msra.mxu0 0.0
    %843 = vmatprep.subr.mxu0 0.0
    %844 = vmatpush1.msra.mxu0 0.0
    %845 = vmatprep.subr.mxu0 0.0
    %846 = vmatpush1.msra.mxu0 0.0
    %847 = vmatprep.subr.mxu0 0.0
    %848 = vmatpush1.msra.mxu0 0.0
    %849 = vmatprep.subr.mxu0 0.0
    %850 = vmatpush1.msra.mxu0 0.0
    %851 = vmatprep.subr.mxu0 0.0
    %852 = vmatpush1.msra.mxu0 0.0
    %853 = vmatprep.subr.mxu0 0.0
    %854 = vmatpush1.msra.mxu0 0.0
    %855 = vmatprep.subr.mxu0 0.0
    %856 = vmatpush1.msra.mxu0 0.0
    %857 = vmatprep.mubr.f32.mxu0 0.0
    %858 = vmatmul.mubr.f32.gmra.mrb[0].mxu0 %v665
    %v859 = vpop.f32.mrb[0].mxu0
    %v860 = vadd.f32 %v791, %v859
    %v861 = vpop.f32.mrb[0].mxu0
    %862 = vmatprep.mubr.f32.mxu0 0.0
    %863 = vmatmul.mubr.f32.gmra.mrb[0].mxu0 %v769
    %v864 = vpop.f32.mrb[0].mxu0
    %v865 = vadd.f32 %v791, %v864
    %v866 = vpop.f32.mrb[0].mxu0
    %867 = vdwg.mxu0
    %v868 = vand.u32 2147483647, %v860
    %vm869 = vcmp.le.f32.partialorder %v868, 0.7853982
    %vm870 = vcmp.lt.s32.totalorder %v860, 0
    %v871 = vand.u32 %v860, 2139095040
    %v872 = vshrl.u32 %v871, 23
    %v873 = vsub.s32 %v872, 127
    %v874 = vand.u32 2147483647, %v860
    %v875 = vand.u32 %v874, 8388607
    %v876 = vor.u32 %v875, 8388608
    %v877 = vsub.s32 0, %v876
    %v878 = vadd.s32 %v873, 1
    %vm879 = vcmp.gt.s32.totalorder %v878, 0
    %v880 = vsel %vm879, %v878, 0
    %v881 = vshrl.u32 %v880, 5
    %v882 = vand.u32 %v880, 31
    %v883 = vsub.s32 32, %v882
    %v884 = vshrl.u32 683565275, %v883
    %v885 = vshll.u32 683565275, %v882
    %v886 = vshrl.u32 2475754826, %v883
    %v887 = vor.u32 %v885, %v886
    %v888 = vshll.u32 2475754826, %v882
    %v889 = vshrl.u32 2131351028, %v883
    %v890 = vor.u32 %v888, %v889
    %v891 = vshll.u32 2131351028, %v882
    %v892 = vshrl.u32 2102212464, %v883
    %v893 = vor.u32 %v891, %v892
    %v894 = vshll.u32 2102212464, %v882
    %v895 = vshrl.u32 920167782, %v883
    %v896 = vor.u32 %v894, %v895
    %v897 = vshll.u32 920167782, %v882
    %v898 = vshrl.u32 1326507024, %v883
    %v899 = vor.u32 %v897, %v898
    %vm900 = vcmp.lt.s32.totalorder %v881, 1
    %vm901 = vcmp.lt.s32.totalorder %v881, 2
    %vm902 = vcmp.lt.s32.totalorder %v881, 3
    %vm903 = vcmp.lt.s32.totalorder %v881, 4
    %v904 = vsel %vm900, %v884, %v887
    %v905 = vsel %vm903, %v893, 2102212464
    %v906 = vsel %vm902, %v890, %v905
    %v907 = vsel %vm901, %v904, %v906
    %v908 = vsel %vm900, %v887, %v890
    %v909 = vsel %vm903, %v896, 920167782
    %v910 = vsel %vm902, %v893, %v909
    %v911 = vsel %vm901, %v908, %v910
    %v912 = vsel %vm900, %v890, %v893
    %v913 = vsel %vm903, %v899, 1326507024
    %v914 = vsel %vm902, %v896, %v913
    %v915 = vsel %vm901, %v912, %v914
    %v916 = vshll.u32 %v876, 8
    %v917 = vmul.u32.u64.compose %v916, %v915
    %v918 = vextract.low.u32 %v917
    %v919 = vextract.high.u32 %v917
    %v920 = vmul.u32.u64.compose %v916, %v911
    %v921 = vextract.low.u32 %v920
    %v922 = vextract.high.u32 %v920
    %v923 = vmul.u32 %v916, %v907
    %v924 = vadd.s32 %v919, %v921
    %vm925 = vc.u32 %v919, %v921
    %v926 = vadd.s32 %v922, 1
    %v927 = vsel %vm925, %v926, %v922
    %v928 = vadd.s32 %v923, %v927
    %v929 = vadd.s32 %v928, 536870912
    %v930 = vshrl.u32 %v929, 30
    %v931 = vshll.u32 %v930, 30
    %v932 = vsub.s32 %v928, %v931
    %vm933 = vcmp.lt.s32.totalorder %v932, 0
    %v934 = vsub.s32 0, %v932
    %v935 = vsel %vm933, %v934, %v932
    %v936 = vclz %v935
    %v937 = vsub.s32 %v936, 2
    %vm938 = vcmp.gt.s32.totalorder 0, %v937
    %v939 = vsel %vm938, 0, %v937
    %v940 = vsub.s32 32, %v939
    %v941 = vshll.u32 %v932, %v939
    %v942 = vshrl.u32 %v924, %v940
    %v943 = vor.u32 %v941, %v942
    %v944 = vsub.s32 4294967266, %v939
    %v945 = vadd.s32 %v944, 127
    %v946 = vshll.u32 %v945, 23
    %v947 = vor.u32 4788187, %v946
    %v948 = vand.u32 2147483647, %v947
    %v950 = vcvt.s32.f32 %v943
    %v951 = vmul.f32 %v950, %v948
    %v952 = vxor.u32 %v951, 2147483648
    %v953 = vsel %vm870, %v952, %v951
    %v954 = vsub.s32 4, %v930
    %v955 = vsel %vm870, %v954, %v930
    %v956 = vsel %vm869, %v860, %v953
    %v957 = vsel %vm869, 0, %v955
    %v958 = vcosq.f32.pop %v956
    %v959 = vsinq.f32.pop %v956
    %vm960 = vweird.f32 %v860
    %v961 = vadd.s32 %v957, 3
    %v962 = vand.u32 %v961, 3
    %vm963 = vcmp.lt.s32.totalorder %v962, 2
    %vm964 = vcmp.eq.s32.totalorder %v962, 0
    %v965 = vxor.u32 %v959, 2147483648
    %v966 = vsel %vm964, %v958, %v965
    %vm967 = vcmp.eq.s32.totalorder %v962, 2
    %v968 = vxor.u32 %v958, 2147483648
    %v969 = vsel %vm967, %v968, %v959
    %v970 = vsel %vm963, %v966, %v969
    %v971 = vsel %vm960, nan, %v970
    %v972 = vand.u32 2147483647, %v865
    %vm973 = vcmp.le.f32.partialorder %v972, 0.7853982
    %vm974 = vcmp.lt.s32.totalorder %v865, 0
    %v975 = vand.u32 %v865, 2139095040
    %v976 = vshrl.u32 %v975, 23
    %v977 = vsub.s32 %v976, 127
    %v978 = vand.u32 2147483647, %v865
    %v979 = vand.u32 %v978, 8388607
    %v980 = vor.u32 %v979, 8388608
    %v981 = vsub.s32 0, %v980
    %v982 = vadd.s32 %v977, 1
    %vm983 = vcmp.gt.s32.totalorder %v982, 0
    %v984 = vsel %vm983, %v982, 0
    %v985 = vshrl.u32 %v984, 5
    %v986 = vand.u32 %v984, 31
    %v987 = vsub.s32 32, %v986
    %v988 = vshrl.u32 683565275, %v987
    %v989 = vshll.u32 683565275, %v986
    %v990 = vshrl.u32 2475754826, %v987
    %v991 = vor.u32 %v989, %v990
    %v992 = vshll.u32 2475754826, %v986
    %v993 = vshrl.u32 2131351028, %v987
    %v994 = vor.u32 %v992, %v993
    %v995 = vshll.u32 2131351028, %v986
    %v996 = vshrl.u32 2102212464, %v987
    %v997 = vor.u32 %v995, %v996
    %v998 = vshll.u32 2102212464, %v986
    %v999 = vshrl.u32 920167782, %v987
    %v1000 = vor.u32 %v998, %v999
    %v1001 = vshll.u32 920167782, %v986
    %v1002 = vshrl.u32 1326507024, %v987
    %v1003 = vor.u32 %v1001, %v1002
    %vm1004 = vcmp.lt.s32.totalorder %v985, 1
    %vm1005 = vcmp.lt.s32.totalorder %v985, 2
    %vm1006 = vcmp.lt.s32.totalorder %v985, 3
    %vm1007 = vcmp.lt.s32.totalorder %v985, 4
    %v1008 = vsel %vm1004, %v988, %v991
    %v1009 = vsel %vm1007, %v997, 2102212464
    %v1010 = vsel %vm1006, %v994, %v1009
    %v1011 = vsel %vm1005, %v1008, %v1010
    %v1012 = vsel %vm1004, %v991, %v994
    %v1013 = vsel %vm1007, %v1000, 920167782
    %v1014 = vsel %vm1006, %v997, %v1013
    %v1015 = vsel %vm1005, %v1012, %v1014
    %v1016 = vsel %vm1004, %v994, %v997
    %v1017 = vsel %vm1007, %v1003, 1326507024
    %v1018 = vsel %vm1006, %v1000, %v1017
    %v1019 = vsel %vm1005, %v1016, %v1018
    %v1020 = vshll.u32 %v980, 8
    %v1021 = vmul.u32.u64.compose %v1020, %v1019
    %v1022 = vextract.low.u32 %v1021
    %v1023 = vextract.high.u32 %v1021
    %v1024 = vmul.u32.u64.compose %v1020, %v1015
    %v1025 = vextract.low.u32 %v1024
    %v1026 = vextract.high.u32 %v1024
    %v1027 = vmul.u32 %v1020, %v1011
    %v1028 = vadd.s32 %v1023, %v1025
    %vm1029 = vc.u32 %v1023, %v1025
    %v1030 = vadd.s32 %v1026, 1
    %v1031 = vsel %vm1029, %v1030, %v1026
    %v1032 = vadd.s32 %v1027, %v1031
    %v1033 = vadd.s32 %v1032, 536870912
    %v1034 = vshrl.u32 %v1033, 30
    %v1035 = vshll.u32 %v1034, 30
    %v1036 = vsub.s32 %v1032, %v1035
    %vm1037 = vcmp.lt.s32.totalorder %v1036, 0
    %v1038 = vsub.s32 0, %v1036
    %v1039 = vsel %vm1037, %v1038, %v1036
    %v1040 = vclz %v1039
    %v1041 = vsub.s32 %v1040, 2
    %vm1042 = vcmp.gt.s32.totalorder 0, %v1041
    %v1043 = vsel %vm1042, 0, %v1041
    %v1044 = vsub.s32 32, %v1043
    %v1045 = vshll.u32 %v1036, %v1043
    %v1046 = vshrl.u32 %v1028, %v1044
    %v1047 = vor.u32 %v1045, %v1046
    %v1048 = vsub.s32 4294967266, %v1043
    %v1049 = vadd.s32 %v1048, 127
    %v1050 = vshll.u32 %v1049, 23
    %v1051 = vor.u32 4788187, %v1050
    %v1052 = vand.u32 2147483647, %v1051
    %v1054 = vcvt.s32.f32 %v1047
    %v1055 = vmul.f32 %v1054, %v1052
    %v1056 = vxor.u32 %v1055, 2147483648
    %v1057 = vsel %vm974, %v1056, %v1055
    %v1058 = vsub.s32 4, %v1034
    %v1059 = vsel %vm974, %v1058, %v1034
    %v1060 = vsel %vm973, %v865, %v1057
    %v1061 = vsel %vm973, 0, %v1059
    %v1062 = vcosq.f32.pop %v1060
    %v1063 = vsinq.f32.pop %v1060
    %vm1064 = vweird.f32 %v865
    %v1065 = vadd.s32 %v1061, 3
    %v1066 = vand.u32 %v1065, 3
    %vm1067 = vcmp.lt.s32.totalorder %v1066, 2
    %vm1068 = vcmp.eq.s32.totalorder %v1066, 0
    %v1069 = vxor.u32 %v1063, 2147483648
    %v1070 = vsel %vm1068, %v1062, %v1069
    %vm1071 = vcmp.eq.s32.totalorder %v1066, 2
    %v1072 = vxor.u32 %v1062, 2147483648
    %v1073 = vsel %vm1071, %v1072, %v1063
    %v1074 = vsel %vm1067, %v1070, %v1073
    %v1075 = vsel %vm1064, nan, %v1074
    %v1076 = vld [vmem:[#allocation14] sm:$0xff]
    %v1077 = vld [vmem:[#allocation14 + $0x8] sm:$0xff]
    %v1078 = vld [vmem:[#allocation14 + $0x10] sm:$0xff]
    %v1079 = vld [vmem:[#allocation14 + $0x18] sm:$0xff]
    %v1080 = vld [vmem:[#allocation14 + $0x20] sm:$0xff]
    %v1081 = vld [vmem:[#allocation14 + $0x28] sm:$0xff]
    %v1082 = vld [vmem:[#allocation14 + $0x30] sm:$0xff]
    %v1083 = vld [vmem:[#allocation14 + $0x38] sm:$0xff]
    %v1084 = vld [vmem:[#allocation14 + $0x40] sm:$0xff]
    %v1085 = vld [vmem:[#allocation14 + $0x48] sm:$0xff]
    %v1086 = vld [vmem:[#allocation14 + $0x50] sm:$0xff]
    %v1087 = vld [vmem:[#allocation14 + $0x58] sm:$0xff]
    %v1088 = vld [vmem:[#allocation14 + $0x60] sm:$0xff]
    %v1089 = vld [vmem:[#allocation14 + $0x68] sm:$0xff]
    %v1090 = vld [vmem:[#allocation14 + $0x70] sm:$0xff]
    %v1091 = vld [vmem:[#allocation14 + $0x78] sm:$0xff]
    %v1092 = vld [vmem:[#allocation16] sm:$0x1]
    %v1094 = vlaneseq
    %v1095 = vshrl.u32 %v1094, 7
    %v1096 = vsub.s32 0, %v1095
    %v1097 = vrot.slane %v1092, %v1096
    %1099 = vmatprep.subr.mxu0 0.0
    %1100 = vmatpush1.msra.mxu0 %v1076
    %1101 = vmatprep.subr.mxu0 0.0
    %1102 = vmatpush1.msra.mxu0 %v1077
    %1103 = vmatprep.subr.mxu0 0.0
    %1104 = vmatpush1.msra.mxu0 %v1078
    %1105 = vmatprep.subr.mxu0 0.0
    %1106 = vmatpush1.msra.mxu0 %v1079
    %1107 = vmatprep.subr.mxu0 0.0
    %1108 = vmatpush1.msra.mxu0 %v1080
    %1109 = vmatprep.subr.mxu0 0.0
    %1110 = vmatpush1.msra.mxu0 %v1081
    %1111 = vmatprep.subr.mxu0 0.0
    %1112 = vmatpush1.msra.mxu0 %v1082
    %1113 = vmatprep.subr.mxu0 0.0
    %1114 = vmatpush1.msra.mxu0 %v1083
    %1115 = vmatprep.subr.mxu0 0.0
    %1116 = vmatpush1.msra.mxu0 %v1084
    %1117 = vmatprep.subr.mxu0 0.0
    %1118 = vmatpush1.msra.mxu0 %v1085
    %1119 = vmatprep.subr.mxu0 0.0
    %1120 = vmatpush1.msra.mxu0 %v1086
    %1121 = vmatprep.subr.mxu0 0.0
    %1122 = vmatpush1.msra.mxu0 %v1087
    %1123 = vmatprep.subr.mxu0 0.0
    %1124 = vmatpush1.msra.mxu0 %v1088
    %1125 = vmatprep.subr.mxu0 0.0
    %1126 = vmatpush1.msra.mxu0 %v1089
    %1127 = vmatprep.subr.mxu0 0.0
    %1128 = vmatpush1.msra.mxu0 %v1090
    %1129 = vmatprep.subr.mxu0 0.0
    %1130 = vmatpush1.msra.mxu0 %v1091
    %1131 = vmatprep.subr.mxu0 0.0
    %1132 = vmatpush1.msra.mxu0 0.0
    %1133 = vmatprep.subr.mxu0 0.0
    %1134 = vmatpush1.msra.mxu0 0.0
    %1135 = vmatprep.subr.mxu0 0.0
    %1136 = vmatpush1.msra.mxu0 0.0
    %1137 = vmatprep.subr.mxu0 0.0
    %1138 = vmatpush1.msra.mxu0 0.0
    %1139 = vmatprep.subr.mxu0 0.0
    %1140 = vmatpush1.msra.mxu0 0.0
    %1141 = vmatprep.subr.mxu0 0.0
    %1142 = vmatpush1.msra.mxu0 0.0
    %1143 = vmatprep.subr.mxu0 0.0
    %1144 = vmatpush1.msra.mxu0 0.0
    %1145 = vmatprep.subr.mxu0 0.0
    %1146 = vmatpush1.msra.mxu0 0.0
    %1147 = vmatprep.subr.mxu0 0.0
    %1148 = vmatpush1.msra.mxu0 0.0
    %1149 = vmatprep.subr.mxu0 0.0
    %1150 = vmatpush1.msra.mxu0 0.0
    %1151 = vmatprep.subr.mxu0 0.0
    %1152 = vmatpush1.msra.mxu0 0.0
    %1153 = vmatprep.subr.mxu0 0.0
    %1154 = vmatpush1.msra.mxu0 0.0
    %1155 = vmatprep.subr.mxu0 0.0
    %1156 = vmatpush1.msra.mxu0 0.0
    %1157 = vmatprep.subr.mxu0 0.0
    %1158 = vmatpush1.msra.mxu0 0.0
    %1159 = vmatprep.subr.mxu0 0.0
    %1160 = vmatpush1.msra.mxu0 0.0
    %1161 = vmatprep.subr.mxu0 0.0
    %1162 = vmatpush1.msra.mxu0 0.0
    %1163 = vmatprep.mubr.f32.mxu0 0.0
    %1164 = vmatmul.mubr.f32.gmra.mrb[0].mxu0 %v971
    %v1165 = vpop.f32.mrb[0].mxu0
    %v1166 = vadd.f32 %v1097, %v1165
    %v1167 = vpop.f32.mrb[0].mxu0
    %1168 = vmatprep.mubr.f32.mxu0 0.0
    %1169 = vmatmul.mubr.f32.gmra.mrb[0].mxu0 %v1075
    %v1170 = vpop.f32.mrb[0].mxu0
    %v1171 = vadd.f32 %v1097, %v1170
    %v1172 = vpop.f32.mrb[0].mxu0
    %1173 = vdwg.mxu0
    %v1174 = vand.u32 2147483647, %v1166
    %vm1175 = vcmp.le.f32.partialorder %v1174, 0.7853982
    %vm1176 = vcmp.lt.s32.totalorder %v1166, 0
    %v1177 = vand.u32 %v1166, 2139095040
    %v1178 = vshrl.u32 %v1177, 23
    %v1179 = vsub.s32 %v1178, 127
    %v1180 = vand.u32 2147483647, %v1166
    %v1181 = vand.u32 %v1180, 8388607
    %v1182 = vor.u32 %v1181, 8388608
    %v1183 = vsub.s32 0, %v1182
    %v1184 = vadd.s32 %v1179, 1
    %vm1185 = vcmp.gt.s32.totalorder %v1184, 0
    %v1186 = vsel %vm1185, %v1184, 0
    %v1187 = vshrl.u32 %v1186, 5
    %v1188 = vand.u32 %v1186, 31
    %v1189 = vsub.s32 32, %v1188
    %v1190 = vshrl.u32 683565275, %v1189
    %v1191 = vshll.u32 683565275, %v1188
    %v1192 = vshrl.u32 2475754826, %v1189
    %v1193 = vor.u32 %v1191, %v1192
    %v1194 = vshll.u32 2475754826, %v1188
    %v1195 = vshrl.u32 2131351028, %v1189
    %v1196 = vor.u32 %v1194, %v1195
    %v1197 = vshll.u32 2131351028, %v1188
    %v1198 = vshrl.u32 2102212464, %v1189
    %v1199 = vor.u32 %v1197, %v1198
    %v1200 = vshll.u32 2102212464, %v1188
    %v1201 = vshrl.u32 920167782, %v1189
    %v1202 = vor.u32 %v1200, %v1201
    %v1203 = vshll.u32 920167782, %v1188
    %v1204 = vshrl.u32 1326507024, %v1189
    %v1205 = vor.u32 %v1203, %v1204
    %vm1206 = vcmp.lt.s32.totalorder %v1187, 1
    %vm1207 = vcmp.lt.s32.totalorder %v1187, 2
    %vm1208 = vcmp.lt.s32.totalorder %v1187, 3
    %vm1209 = vcmp.lt.s32.totalorder %v1187, 4
    %v1210 = vsel %vm1206, %v1190, %v1193
    %v1211 = vsel %vm1209, %v1199, 2102212464
    %v1212 = vsel %vm1208, %v1196, %v1211
    %v1213 = vsel %vm1207, %v1210, %v1212
    %v1214 = vsel %vm1206, %v1193, %v1196
    %v1215 = vsel %vm1209, %v1202, 920167782
    %v1216 = vsel %vm1208, %v1199, %v1215
    %v1217 = vsel %vm1207, %v1214, %v1216
    %v1218 = vsel %vm1206, %v1196, %v1199
    %v1219 = vsel %vm1209, %v1205, 1326507024
    %v1220 = vsel %vm1208, %v1202, %v1219
    %v1221 = vsel %vm1207, %v1218, %v1220
    %v1222 = vshll.u32 %v1182, 8
    %v1223 = vmul.u32.u64.compose %v1222, %v1221
    %v1224 = vextract.low.u32 %v1223
    %v1225 = vextract.high.u32 %v1223
    %v1226 = vmul.u32.u64.compose %v1222, %v1217
    %v1227 = vextract.low.u32 %v1226
    %v1228 = vextract.high.u32 %v1226
    %v1229 = vmul.u32 %v1222, %v1213
    %v1230 = vadd.s32 %v1225, %v1227
    %vm1231 = vc.u32 %v1225, %v1227
    %v1232 = vadd.s32 %v1228, 1
    %v1233 = vsel %vm1231, %v1232, %v1228
    %v1234 = vadd.s32 %v1229, %v1233
    %v1235 = vadd.s32 %v1234, 536870912
    %v1236 = vshrl.u32 %v1235, 30
    %v1237 = vshll.u32 %v1236, 30
    %v1238 = vsub.s32 %v1234, %v1237
    %vm1239 = vcmp.lt.s32.totalorder %v1238, 0
    %v1240 = vsub.s32 0, %v1238
    %v1241 = vsel %vm1239, %v1240, %v1238
    %v1242 = vclz %v1241
    %v1243 = vsub.s32 %v1242, 2
    %vm1244 = vcmp.gt.s32.totalorder 0, %v1243
    %v1245 = vsel %vm1244, 0, %v1243
    %v1246 = vsub.s32 32, %v1245
    %v1247 = vshll.u32 %v1238, %v1245
    %v1248 = vshrl.u32 %v1230, %v1246
    %v1249 = vor.u32 %v1247, %v1248
    %v1250 = vsub.s32 4294967266, %v1245
    %v1251 = vadd.s32 %v1250, 127
    %v1252 = vshll.u32 %v1251, 23
    %v1253 = vor.u32 4788187, %v1252
    %v1254 = vand.u32 2147483647, %v1253
    %v1256 = vcvt.s32.f32 %v1249
    %v1257 = vmul.f32 %v1256, %v1254
    %v1258 = vxor.u32 %v1257, 2147483648
    %v1259 = vsel %vm1176, %v1258, %v1257
    %v1260 = vsub.s32 4, %v1236
    %v1261 = vsel %vm1176, %v1260, %v1236
    %v1262 = vsel %vm1175, %v1166, %v1259
    %v1263 = vsel %vm1175, 0, %v1261
    %v1264 = vcosq.f32.pop %v1262
    %v1265 = vsinq.f32.pop %v1262
    %vm1266 = vweird.f32 %v1166
    %v1267 = vadd.s32 %v1263, 3
    %v1268 = vand.u32 %v1267, 3
    %vm1269 = vcmp.lt.s32.totalorder %v1268, 2
    %vm1270 = vcmp.eq.s32.totalorder %v1268, 0
    %v1271 = vxor.u32 %v1265, 2147483648
    %v1272 = vsel %vm1270, %v1264, %v1271
    %vm1273 = vcmp.eq.s32.totalorder %v1268, 2
    %v1274 = vxor.u32 %v1264, 2147483648
    %v1275 = vsel %vm1273, %v1274, %v1265
    %v1276 = vsel %vm1269, %v1272, %v1275
    %v1277 = vsel %vm1266, nan, %v1276
    %v1278 = vand.u32 2147483647, %v1171
    %vm1279 = vcmp.le.f32.partialorder %v1278, 0.7853982
    %vm1280 = vcmp.lt.s32.totalorder %v1171, 0
    %v1281 = vand.u32 %v1171, 2139095040
    %v1282 = vshrl.u32 %v1281, 23
    %v1283 = vsub.s32 %v1282, 127
    %v1284 = vand.u32 2147483647, %v1171
    %v1285 = vand.u32 %v1284, 8388607
    %v1286 = vor.u32 %v1285, 8388608
    %v1287 = vsub.s32 0, %v1286
    %v1288 = vadd.s32 %v1283, 1
    %vm1289 = vcmp.gt.s32.totalorder %v1288, 0
    %v1290 = vsel %vm1289, %v1288, 0
    %v1291 = vshrl.u32 %v1290, 5
    %v1292 = vand.u32 %v1290, 31
    %v1293 = vsub.s32 32, %v1292
    %v1294 = vshrl.u32 683565275, %v1293
    %v1295 = vshll.u32 683565275, %v1292
    %v1296 = vshrl.u32 2475754826, %v1293
    %v1297 = vor.u32 %v1295, %v1296
    %v1298 = vshll.u32 2475754826, %v1292
    %v1299 = vshrl.u32 2131351028, %v1293
    %v1300 = vor.u32 %v1298, %v1299
    %v1301 = vshll.u32 2131351028, %v1292
    %v1302 = vshrl.u32 2102212464, %v1293
    %v1303 = vor.u32 %v1301, %v1302
    %v1304 = vshll.u32 2102212464, %v1292
    %v1305 = vshrl.u32 920167782, %v1293
    %v1306 = vor.u32 %v1304, %v1305
    %v1307 = vshll.u32 920167782, %v1292
    %v1308 = vshrl.u32 1326507024, %v1293
    %v1309 = vor.u32 %v1307, %v1308
    %vm1310 = vcmp.lt.s32.totalorder %v1291, 1
    %vm1311 = vcmp.lt.s32.totalorder %v1291, 2
    %vm1312 = vcmp.lt.s32.totalorder %v1291, 3
    %vm1313 = vcmp.lt.s32.totalorder %v1291, 4
    %v1314 = vsel %vm1310, %v1294, %v1297
    %v1315 = vsel %vm1313, %v1303, 2102212464
    %v1316 = vsel %vm1312, %v1300, %v1315
    %v1317 = vsel %vm1311, %v1314, %v1316
    %v1318 = vsel %vm1310, %v1297, %v1300
    %v1319 = vsel %vm1313, %v1306, 920167782
    %v1320 = vsel %vm1312, %v1303, %v1319
    %v1321 = vsel %vm1311, %v1318, %v1320
    %v1322 = vsel %vm1310, %v1300, %v1303
    %v1323 = vsel %vm1313, %v1309, 1326507024
    %v1324 = vsel %vm1312, %v1306, %v1323
    %v1325 = vsel %vm1311, %v1322, %v1324
    %v1326 = vshll.u32 %v1286, 8
    %v1327 = vmul.u32.u64.compose %v1326, %v1325
    %v1328 = vextract.low.u32 %v1327
    %v1329 = vextract.high.u32 %v1327
    %v1330 = vmul.u32.u64.compose %v1326, %v1321
    %v1331 = vextract.low.u32 %v1330
    %v1332 = vextract.high.u32 %v1330
    %v1333 = vmul.u32 %v1326, %v1317
    %v1334 = vadd.s32 %v1329, %v1331
    %vm1335 = vc.u32 %v1329, %v1331
    %v1336 = vadd.s32 %v1332, 1
    %v1337 = vsel %vm1335, %v1336, %v1332
    %v1338 = vadd.s32 %v1333, %v1337
    %v1339 = vadd.s32 %v1338, 536870912
    %v1340 = vshrl.u32 %v1339, 30
    %v1341 = vshll.u32 %v1340, 30
    %v1342 = vsub.s32 %v1338, %v1341
    %vm1343 = vcmp.lt.s32.totalorder %v1342, 0
    %v1344 = vsub.s32 0, %v1342
    %v1345 = vsel %vm1343, %v1344, %v1342
    %v1346 = vclz %v1345
    %v1347 = vsub.s32 %v1346, 2
    %vm1348 = vcmp.gt.s32.totalorder 0, %v1347
    %v1349 = vsel %vm1348, 0, %v1347
    %v1350 = vsub.s32 32, %v1349
    %v1351 = vshll.u32 %v1342, %v1349
    %v1352 = vshrl.u32 %v1334, %v1350
    %v1353 = vor.u32 %v1351, %v1352
    %v1354 = vsub.s32 4294967266, %v1349
    %v1355 = vadd.s32 %v1354, 127
    %v1356 = vshll.u32 %v1355, 23
    %v1357 = vor.u32 4788187, %v1356
    %v1358 = vand.u32 2147483647, %v1357
    %v1360 = vcvt.s32.f32 %v1353
    %v1361 = vmul.f32 %v1360, %v1358
    %v1362 = vxor.u32 %v1361, 2147483648
    %v1363 = vsel %vm1280, %v1362, %v1361
    %v1364 = vsub.s32 4, %v1340
    %v1365 = vsel %vm1280, %v1364, %v1340
    %v1366 = vsel %vm1279, %v1171, %v1363
    %v1367 = vsel %vm1279, 0, %v1365
    %v1368 = vcosq.f32.pop %v1366
    %v1369 = vsinq.f32.pop %v1366
    %vm1370 = vweird.f32 %v1171
    %v1371 = vadd.s32 %v1367, 3
    %v1372 = vand.u32 %v1371, 3
    %vm1373 = vcmp.lt.s32.totalorder %v1372, 2
    %vm1374 = vcmp.eq.s32.totalorder %v1372, 0
    %v1375 = vxor.u32 %v1369, 2147483648
    %v1376 = vsel %vm1374, %v1368, %v1375
    %vm1377 = vcmp.eq.s32.totalorder %v1372, 2
    %v1378 = vxor.u32 %v1368, 2147483648
    %v1379 = vsel %vm1377, %v1378, %v1369
    %v1380 = vsel %vm1373, %v1376, %v1379
    %v1381 = vsel %vm1370, nan, %v1380
    %v1382 = vld [vmem:[#allocation17] sm:$0xff]
    %v1383 = vld [vmem:[#allocation17 + $0x8] sm:$0xff]
    %v1384 = vld [vmem:[#allocation17 + $0x10] sm:$0xff]
    %v1385 = vld [vmem:[#allocation17 + $0x18] sm:$0xff]
    %v1386 = vld [vmem:[#allocation17 + $0x20] sm:$0xff]
    %v1387 = vld [vmem:[#allocation17 + $0x28] sm:$0xff]
    %v1388 = vld [vmem:[#allocation17 + $0x30] sm:$0xff]
    %v1389 = vld [vmem:[#allocation17 + $0x38] sm:$0xff]
    %v1390 = vld [vmem:[#allocation17 + $0x40] sm:$0xff]
    %v1391 = vld [vmem:[#allocation17 + $0x48] sm:$0xff]
    %v1392 = vld [vmem:[#allocation17 + $0x50] sm:$0xff]
    %v1393 = vld [vmem:[#allocation17 + $0x58] sm:$0xff]
    %v1394 = vld [vmem:[#allocation17 + $0x60] sm:$0xff]
    %v1395 = vld [vmem:[#allocation17 + $0x68] sm:$0xff]
    %v1396 = vld [vmem:[#allocation17 + $0x70] sm:$0xff]
    %v1397 = vld [vmem:[#allocation17 + $0x78] sm:$0xff]
    %v1398 = vld [vmem:[#allocation19] sm:$0x1]
    %v1400 = vlaneseq
    %v1401 = vshrl.u32 %v1400, 7
    %v1402 = vsub.s32 0, %v1401
    %v1403 = vrot.slane %v1398, %v1402
    %1405 = vmatprep.subr.mxu0 0.0
    %1406 = vmatpush1.msra.mxu0 %v1382
    %1407 = vmatprep.subr.mxu0 0.0
    %1408 = vmatpush1.msra.mxu0 %v1383
    %1409 = vmatprep.subr.mxu0 0.0
    %1410 = vmatpush1.msra.mxu0 %v1384
    %1411 = vmatprep.subr.mxu0 0.0
    %1412 = vmatpush1.msra.mxu0 %v1385
    %1413 = vmatprep.subr.mxu0 0.0
    %1414 = vmatpush1.msra.mxu0 %v1386
    %1415 = vmatprep.subr.mxu0 0.0
    %1416 = vmatpush1.msra.mxu0 %v1387
    %1417 = vmatprep.subr.mxu0 0.0
    %1418 = vmatpush1.msra.mxu0 %v1388
    %1419 = vmatprep.subr.mxu0 0.0
    %1420 = vmatpush1.msra.mxu0 %v1389
    %1421 = vmatprep.subr.mxu0 0.0
    %1422 = vmatpush1.msra.mxu0 %v1390
    %1423 = vmatprep.subr.mxu0 0.0
    %1424 = vmatpush1.msra.mxu0 %v1391
    %1425 = vmatprep.subr.mxu0 0.0
    %1426 = vmatpush1.msra.mxu0 %v1392
    %1427 = vmatprep.subr.mxu0 0.0
    %1428 = vmatpush1.msra.mxu0 %v1393
    %1429 = vmatprep.subr.mxu0 0.0
    %1430 = vmatpush1.msra.mxu0 %v1394
    %1431 = vmatprep.subr.mxu0 0.0
    %1432 = vmatpush1.msra.mxu0 %v1395
    %1433 = vmatprep.subr.mxu0 0.0
    %1434 = vmatpush1.msra.mxu0 %v1396
    %1435 = vmatprep.subr.mxu0 0.0
    %1436 = vmatpush1.msra.mxu0 %v1397
    %1437 = vmatprep.subr.mxu0 0.0
    %1438 = vmatpush1.msra.mxu0 0.0
    %1439 = vmatprep.subr.mxu0 0.0
    %1440 = vmatpush1.msra.mxu0 0.0
    %1441 = vmatprep.subr.mxu0 0.0
    %1442 = vmatpush1.msra.mxu0 0.0
    %1443 = vmatprep.subr.mxu0 0.0
    %1444 = vmatpush1.msra.mxu0 0.0
    %1445 = vmatprep.subr.mxu0 0.0
    %1446 = vmatpush1.msra.mxu0 0.0
    %1447 = vmatprep.subr.mxu0 0.0
    %1448 = vmatpush1.msra.mxu0 0.0
    %1449 = vmatprep.subr.mxu0 0.0
    %1450 = vmatpush1.msra.mxu0 0.0
    %1451 = vmatprep.subr.mxu0 0.0
    %1452 = vmatpush1.msra.mxu0 0.0
    %1453 = vmatprep.subr.mxu0 0.0
    %1454 = vmatpush1.msra.mxu0 0.0
    %1455 = vmatprep.subr.mxu0 0.0
    %1456 = vmatpush1.msra.mxu0 0.0
    %1457 = vmatprep.subr.mxu0 0.0
    %1458 = vmatpush1.msra.mxu0 0.0
    %1459 = vmatprep.subr.mxu0 0.0
    %1460 = vmatpush1.msra.mxu0 0.0
    %1461 = vmatprep.subr.mxu0 0.0
    %1462 = vmatpush1.msra.mxu0 0.0
    %1463 = vmatprep.subr.mxu0 0.0
    %1464 = vmatpush1.msra.mxu0 0.0
    %1465 = vmatprep.subr.mxu0 0.0
    %1466 = vmatpush1.msra.mxu0 0.0
    %1467 = vmatprep.subr.mxu0 0.0
    %1468 = vmatpush1.msra.mxu0 0.0
    %1469 = vmatprep.mubr.f32.mxu0 0.0
    %1470 = vmatmul.mubr.f32.gmra.mrb[0].mxu0 %v1277
    %v1471 = vpop.f32.mrb[0].mxu0
    %v1472 = vadd.f32 %v1403, %v1471
    %v1473 = vpop.f32.mrb[0].mxu0
    %1474 = vmatprep.mubr.f32.mxu0 0.0
    %1475 = vmatmul.mubr.f32.gmra.mrb[0].mxu0 %v1381
    %v1476 = vpop.f32.mrb[0].mxu0
    %v1477 = vadd.f32 %v1403, %v1476
    %v1478 = vpop.f32.mrb[0].mxu0
    %1479 = vdwg.mxu0
    %1480 = vst [vmem:[#allocation20] sm:$0xff] %v1472
    %1481 = vst [vmem:[#allocation20 + $0x8] sm:$0xff] %v1477
    // Predicated region
    $region90: #{tpu_custom_call.1} parent=1 // pred_check
      _
    $region91: #{tpu_custom_call.1} parent=1 // pred_check_branch
      %1483 = sbr.rel (0) target = $region93
    $region92: #{tpu_custom_call.1} parent=1 // pred_region
      %s1485 = ssub.s32 256, 256
      %1486 = vsyncadd [#allocation4], %s1485
      %s1487 = sshll.u32 [#allocation20], 4
      %s1488 = int_to_ptr.vmem [resolvable:$true] %s1487
      %1493 = dma.vmem_to_hbm [thread:$0]  %s1488, 256, %s11, [#allocation4], 128, 128, 8
    $region93: #{tpu_custom_call.1} parent=1 // pred_fallthru
      _
    // Predicated region
    $region94: #{tpu_custom_call.1} parent=1 // pred_check
      _
    $region95: #{tpu_custom_call.1} parent=1 // pred_check_branch
      %1495 = sbr.rel (0) target = $region97
    $region96: #{tpu_custom_call.1} parent=1 // pred_region
      %1496 = dma.done [#allocation4], 256
    $region97: #{tpu_custom_call.1} parent=1 // pred_fallthru
      _
    %1497 = vsyncpa [#allocation3], 1
    %1498 = vsyncpa [#allocation6], 1
    %1499 = vsyncpa [#allocation9], 1
    %1500 = vsyncpa [#allocation12], 1
    %1501 = vsyncpa [#allocation15], 1
    %1502 = vsyncpa [#allocation18], 1
    %1503 = vsyncpa [#allocation4], 1

</llo_original>
